<compile_context>
chip_gen: v7x
topology: tpu7x:2x2x1
jax: 0.10.0
libtpu: 0.0.40
codegen_flags: <defaults>
</compile_context>

<pallas_src>
import math

import numpy as np

import jax
import jax.numpy as jnp
from jax.experimental import pallas as pl
from jax.experimental.pallas import tpu as pltpu


# ---------------------------------------------------------------------------
# Kernels
# ---------------------------------------------------------------------------
def _conv3x3_kernel(xp_ref, w_ref, o_ref):
    # xp_ref: (1, TH+2, W+2, Cin) zero-padded, haloed input row tile (f32)
    # w_ref : (9, Cin, Cout) conv taps, bf16, VMEM-resident across the grid
    # o_ref : (1, TH, W, Cout) output row tile (f32)
    _, th, wd, cout = o_ref.shape
    cin = xp_ref.shape[-1]
    acc = jnp.zeros((th * wd, cout), jnp.float32)
    for ky in range(3):
        for kx in range(3):
            # Shifted window read straight from the ref (static strided slice),
            # flattened to an (M, Cin) matmul operand; bf16 into the MXU,
            # f32 accumulation.
            patch = xp_ref[0, ky:ky + th, kx:kx + wd, :]
            patch = patch.reshape(th * wd, cin).astype(jnp.bfloat16)
            acc = acc + jnp.dot(patch, w_ref[ky * 3 + kx],
                                preferred_element_type=jnp.float32)
    o_ref[...] = acc.reshape(1, th, wd, cout)


def _bilinear_kernel(x_ref, m_ref, o_ref):
    # x_ref: (1, H, W, C) full input image (resident across its row tiles)
    # m_ref: (THo*Wo, H*W) bilinear interpolation weights for this row tile
    # o_ref: (1, THo, Wo, C)
    _, h, w, c = x_ref.shape
    _, tho, wo, _ = o_ref.shape
    xf = x_ref[...].reshape(h * w, c)
    y = jnp.dot(m_ref[...], xf, preferred_element_type=jnp.float32)
    o_ref[...] = y.reshape(1, tho, wo, c)


# ---------------------------------------------------------------------------
# Wrappers
# ---------------------------------------------------------------------------
def conv3x3_same(x, w_hwio, *, row_tile=8):
    """Conv2d(Cin, Cout, (3,3), stride=1, padding=1, bias=False) on NHWC."""
    n, h, w, cin = x.shape
    cout = w_hwio.shape[-1]
    th = row_tile if (h % row_tile == 0 and h >= row_tile) else h
    nt = h // th

    # Zero padding (PyTorch padding=1) + staging of overlapping haloed row
    # windows so the conv kernel can be gridded with plain Blocked BlockSpecs
    # and double-buffered DMAs (no 9x im2col blow-up; ~(TH+2)/TH extra copy).
    xp = jnp.pad(x, ((0, 0), (1, 1), (1, 1), (0, 0)))
    xt = jnp.stack([xp[:, t * th:t * th + th + 2] for t in range(nt)], axis=1)
    xt = xt.reshape(n * nt, th + 2, w + 2, cin)

    wf = w_hwio.reshape(9, cin, cout).astype(jnp.bfloat16)

    return pl.pallas_call(
        _conv3x3_kernel,
        out_shape=jax.ShapeDtypeStruct((n, h, w, cout), jnp.float32),
        grid=(n, nt),
        in_specs=[
            pl.BlockSpec((1, th + 2, w + 2, cin),
                         lambda b, t: (b * nt + t, 0, 0, 0)),
            pl.BlockSpec((9, cin, cout), lambda b, t: (0, 0, 0)),  # resident
        ],
        out_specs=pl.BlockSpec((1, th, w, cout), lambda b, t: (b, t, 0, 0)),
        compiler_params=pltpu.CompilerParams(
            dimension_semantics=("parallel", "parallel")),
    )(xt, wf)


def _interp_matrix_1d(n_in, n_out):
    """align_corners=True linear interpolation weights, (n_out, n_in)."""
    a = np.zeros((n_out, n_in), np.float32)
    if n_in == 1:
        a[:, 0] = 1.0
        return a
    scale = (n_in - 1) / (n_out - 1)
    for i in range(n_out):
        s = i * scale
        i0 = min(int(math.floor(s)), n_in - 2)
        f = s - i0
        a[i, i0] = 1.0 - f
        a[i, i0 + 1] = f
    return a


def bilinear_upsample_2x(x, *, row_tile=8):
    """F.interpolate(scale_factor=2, mode='bilinear', align_corners=True), NHWC."""
    n, h, w, c = x.shape
    ho, wo = 2 * h, 2 * w
    tho = row_tile if (ho % row_tile == 0 and ho >= row_tile) else ho
    nt = ho // tho

    # Precomputed dense interpolation weights (kron of separable row/col
    # weights); kept f32 for accuracy.  Weight rows are streamed per output
    # row tile, the input image stays resident per batch element.
    # TODO(synk): for production spatial sizes use the separable row/col
    # matmul form instead of the dense kron matrix (kron is O((H*W)^2)).
    m = jnp.asarray(np.kron(_interp_matrix_1d(h, ho), _interp_matrix_1d(w, wo)))

    return pl.pallas_call(
        _bilinear_kernel,
        out_shape=jax.ShapeDtypeStruct((n, ho, wo, c), jnp.float32),
        grid=(n, nt),
        in_specs=[
            pl.BlockSpec((1, h, w, c), lambda b, t: (b, 0, 0, 0)),   # resident
            pl.BlockSpec((tho * wo, h * w), lambda b, t: (t, 0)),
        ],
        out_specs=pl.BlockSpec((1, tho, wo, c), lambda b, t: (b, t, 0, 0)),
        compiler_params=pltpu.CompilerParams(
            dimension_semantics=("parallel", "parallel")),
    )(x, m)


def interpolate_forward(x, w_hwio, *, upsample=False):
    """Forward pass of the `Interpolate` module (NHWC activations)."""
    y = conv3x3_same(x, w_hwio)
    if upsample:
        y = bilinear_upsample_2x(y)
    return y


# ---------------------------------------------------------------------------
if __name__ == "__main__":
    key = jax.random.PRNGKey(0)
    kx, kw = jax.random.split(key)

    n, h, w = 2, 16, 16
    in_channels, out_channels = 4, 8

    # NHWC input; the equivalent torch input would be (2, 4, 16, 16) in NCHW.
    x = jax.random.normal(kx, (n, h, w, in_channels), jnp.float32)
    # Conv weight in HWIO (3, 3, Cin, Cout); no bias (as in the reference).
    w_conv = jax.random.normal(
        kw, (3, 3, in_channels, out_channels), jnp.float32
    ) / math.sqrt(9.0 * in_channels)

    # --- conv kernel vs. pure-XLA reference (generous bf16 tolerance) -------
    y_conv = conv3x3_same(x, w_conv)
    y_conv_ref = jax.lax.conv_general_dilated(
        x, w_conv, window_strides=(1, 1), padding="SAME",
        dimension_numbers=("NHWC", "HWIO", "NHWC"))
    conv_err = float(jnp.max(jnp.abs(y_conv - y_conv_ref)))
    assert conv_err < 1e-1, conv_err

    # --- bilinear kernel vs. pure-JAX separable reference -------------------
    a_h = jnp.asarray(_interp_matrix_1d(h, 2 * h))
    a_w = jnp.asarray(_interp_matrix_1d(w, 2 * w))
    y_up = bilinear_upsample_2x(y_conv)
    y_up_ref = jnp.einsum("oh,jw,nhwc->nojc", a_h, a_w, y_conv)
    up_err = float(jnp.max(jnp.abs(y_up - y_up_ref)))
    assert up_err < 5e-2, up_err

    # --- full module forward -------------------------------------------------
    y = interpolate_forward(x, w_conv, upsample=True)
    y = jax.block_until_ready(y)

    assert y.shape == (n, 2 * h, 2 * w, out_channels), y.shape
    assert bool(jnp.all(jnp.isfinite(y)))
    print("KERNEL_OK")
</pallas_src>

<mosaic_0001>
module attributes {stable_mosaic.version = 11 : i64} {
  func.func @_conv3x3_kernel(%arg0: i32, %arg1: i32, %arg2: memref<1x10x18x4xf32, #tpu.memory_space<vmem>>, %arg3: memref<9x4x8xbf16, #tpu.memory_space<vmem>>, %arg4: memref<1x8x16x8xf32, #tpu.memory_space<vmem>>) attributes {dimension_semantics = [#tpu.dimension_semantics<parallel>, #tpu.dimension_semantics<parallel>], iteration_bounds = array<i64: 2, 2>, scalar_prefetch = 0 : i64, scratch_operands = 0 : i64, tpu.core_type = #tpu.core_type<tc>, window_params = [{transform_indices = @transform_0, window_bounds = array<i64: 1, 10, 18, 4>}, {pipeline_mode = #tpu.pipeline_mode<synchronous>, transform_indices = @transform_1, window_bounds = array<i64: 9, 4, 8>}, {transform_indices = @transform_2, window_bounds = array<i64: 1, 8, 16, 8>}]} {
    %cst = arith.constant 0.000000e+00 : f32
    %0 = vector.broadcast %cst : f32 to vector<128x8xf32>
    %c0 = arith.constant 0 : index
    %c0_0 = arith.constant 0 : index
    %c0_1 = arith.constant 0 : index
    %c0_2 = arith.constant 0 : index
    %1 = vector.load %arg2[%c0, %c0_0, %c0_1, %c0_2] : memref<1x10x18x4xf32, #tpu.memory_space<vmem>>, vector<1x8x16x4xf32>
    %2 = vector.shape_cast %1 : vector<1x8x16x4xf32> to vector<8x16x4xf32>
    %3 = vector.shape_cast %2 : vector<8x16x4xf32> to vector<128x4xf32>
    %4 = arith.truncf %3 : vector<128x4xf32> to vector<128x4xbf16>
    %c0_3 = arith.constant 0 : index
    %c0_4 = arith.constant 0 : index
    %c0_5 = arith.constant 0 : index
    %5 = vector.load %arg3[%c0_3, %c0_4, %c0_5] : memref<9x4x8xbf16, #tpu.memory_space<vmem>>, vector<1x4x8xbf16>
    %6 = vector.shape_cast %5 : vector<1x4x8xbf16> to vector<4x8xbf16>
    %cst_6 = arith.constant dense<0.000000e+00> : vector<128x8xf32>
    %7 = tpu.matmul %4, %6, %cst_6 {dimension_numbers = #tpu.dot_dimension_numbers<[1], [0], [0], [1], [0, 0, 1, 1], [], []>} : vector<128x4xbf16>, vector<4x8xbf16>, vector<128x8xf32> -> vector<128x8xf32>
    %8 = arith.addf %0, %7 : vector<128x8xf32>
    %c0_7 = arith.constant 0 : index
    %c0_8 = arith.constant 0 : index
    %c1 = arith.constant 1 : index
    %c0_9 = arith.constant 0 : index
    %9 = vector.load %arg2[%c0_7, %c0_8, %c1, %c0_9] : memref<1x10x18x4xf32, #tpu.memory_space<vmem>>, vector<1x8x16x4xf32>
    %10 = vector.shape_cast %9 : vector<1x8x16x4xf32> to vector<8x16x4xf32>
    %11 = vector.shape_cast %10 : vector<8x16x4xf32> to vector<128x4xf32>
    %12 = arith.truncf %11 : vector<128x4xf32> to vector<128x4xbf16>
    %c1_10 = arith.constant 1 : index
    %c0_11 = arith.constant 0 : index
    %c0_12 = arith.constant 0 : index
    %13 = vector.load %arg3[%c1_10, %c0_11, %c0_12] : memref<9x4x8xbf16, #tpu.memory_space<vmem>>, vector<1x4x8xbf16>
    %14 = vector.shape_cast %13 : vector<1x4x8xbf16> to vector<4x8xbf16>
    %cst_13 = arith.constant dense<0.000000e+00> : vector<128x8xf32>
    %15 = tpu.matmul %12, %14, %cst_13 {dimension_numbers = #tpu.dot_dimension_numbers<[1], [0], [0], [1], [0, 0, 1, 1], [], []>} : vector<128x4xbf16>, vector<4x8xbf16>, vector<128x8xf32> -> vector<128x8xf32>
    %16 = arith.addf %8, %15 : vector<128x8xf32>
    %c0_14 = arith.constant 0 : index
    %c0_15 = arith.constant 0 : index
    %c2 = arith.constant 2 : index
    %c0_16 = arith.constant 0 : index
    %17 = vector.load %arg2[%c0_14, %c0_15, %c2, %c0_16] : memref<1x10x18x4xf32, #tpu.memory_space<vmem>>, vector<1x8x16x4xf32>
    %18 = vector.shape_cast %17 : vector<1x8x16x4xf32> to vector<8x16x4xf32>
    %19 = vector.shape_cast %18 : vector<8x16x4xf32> to vector<128x4xf32>
    %20 = arith.truncf %19 : vector<128x4xf32> to vector<128x4xbf16>
    %c2_17 = arith.constant 2 : index
    %c0_18 = arith.constant 0 : index
    %c0_19 = arith.constant 0 : index
    %21 = vector.load %arg3[%c2_17, %c0_18, %c0_19] : memref<9x4x8xbf16, #tpu.memory_space<vmem>>, vector<1x4x8xbf16>
    %22 = vector.shape_cast %21 : vector<1x4x8xbf16> to vector<4x8xbf16>
    %cst_20 = arith.constant dense<0.000000e+00> : vector<128x8xf32>
    %23 = tpu.matmul %20, %22, %cst_20 {dimension_numbers = #tpu.dot_dimension_numbers<[1], [0], [0], [1], [0, 0, 1, 1], [], []>} : vector<128x4xbf16>, vector<4x8xbf16>, vector<128x8xf32> -> vector<128x8xf32>
    %24 = arith.addf %16, %23 : vector<128x8xf32>
    %c0_21 = arith.constant 0 : index
    %c1_22 = arith.constant 1 : index
    %c0_23 = arith.constant 0 : index
    %c0_24 = arith.constant 0 : index
    %25 = vector.load %arg2[%c0_21, %c1_22, %c0_23, %c0_24] : memref<1x10x18x4xf32, #tpu.memory_space<vmem>>, vector<1x8x16x4xf32>
    %26 = vector.shape_cast %25 : vector<1x8x16x4xf32> to vector<8x16x4xf32>
    %27 = vector.shape_cast %26 : vector<8x16x4xf32> to vector<128x4xf32>
    %28 = arith.truncf %27 : vector<128x4xf32> to vector<128x4xbf16>
    %c3 = arith.constant 3 : index
    %c0_25 = arith.constant 0 : index
    %c0_26 = arith.constant 0 : index
    %29 = vector.load %arg3[%c3, %c0_25, %c0_26] : memref<9x4x8xbf16, #tpu.memory_space<vmem>>, vector<1x4x8xbf16>
    %30 = vector.shape_cast %29 : vector<1x4x8xbf16> to vector<4x8xbf16>
    %cst_27 = arith.constant dense<0.000000e+00> : vector<128x8xf32>
    %31 = tpu.matmul %28, %30, %cst_27 {dimension_numbers = #tpu.dot_dimension_numbers<[1], [0], [0], [1], [0, 0, 1, 1], [], []>} : vector<128x4xbf16>, vector<4x8xbf16>, vector<128x8xf32> -> vector<128x8xf32>
    %32 = arith.addf %24, %31 : vector<128x8xf32>
    %c0_28 = arith.constant 0 : index
    %c1_29 = arith.constant 1 : index
    %c1_30 = arith.constant 1 : index
    %c0_31 = arith.constant 0 : index
    %33 = vector.load %arg2[%c0_28, %c1_29, %c1_30, %c0_31] : memref<1x10x18x4xf32, #tpu.memory_space<vmem>>, vector<1x8x16x4xf32>
    %34 = vector.shape_cast %33 : vector<1x8x16x4xf32> to vector<8x16x4xf32>
    %35 = vector.shape_cast %34 : vector<8x16x4xf32> to vector<128x4xf32>
    %36 = arith.truncf %35 : vector<128x4xf32> to vector<128x4xbf16>
    %c4 = arith.constant 4 : index
    %c0_32 = arith.constant 0 : index
    %c0_33 = arith.constant 0 : index
    %37 = vector.load %arg3[%c4, %c0_32, %c0_33] : memref<9x4x8xbf16, #tpu.memory_space<vmem>>, vector<1x4x8xbf16>
    %38 = vector.shape_cast %37 : vector<1x4x8xbf16> to vector<4x8xbf16>
    %cst_34 = arith.constant dense<0.000000e+00> : vector<128x8xf32>
    %39 = tpu.matmul %36, %38, %cst_34 {dimension_numbers = #tpu.dot_dimension_numbers<[1], [0], [0], [1], [0, 0, 1, 1], [], []>} : vector<128x4xbf16>, vector<4x8xbf16>, vector<128x8xf32> -> vector<128x8xf32>
    %40 = arith.addf %32, %39 : vector<128x8xf32>
    %c0_35 = arith.constant 0 : index
    %c1_36 = arith.constant 1 : index
    %c2_37 = arith.constant 2 : index
    %c0_38 = arith.constant 0 : index
    %41 = vector.load %arg2[%c0_35, %c1_36, %c2_37, %c0_38] : memref<1x10x18x4xf32, #tpu.memory_space<vmem>>, vector<1x8x16x4xf32>
    %42 = vector.shape_cast %41 : vector<1x8x16x4xf32> to vector<8x16x4xf32>
    %43 = vector.shape_cast %42 : vector<8x16x4xf32> to vector<128x4xf32>
    %44 = arith.truncf %43 : vector<128x4xf32> to vector<128x4xbf16>
    %c5 = arith.constant 5 : index
    %c0_39 = arith.constant 0 : index
    %c0_40 = arith.constant 0 : index
    %45 = vector.load %arg3[%c5, %c0_39, %c0_40] : memref<9x4x8xbf16, #tpu.memory_space<vmem>>, vector<1x4x8xbf16>
    %46 = vector.shape_cast %45 : vector<1x4x8xbf16> to vector<4x8xbf16>
    %cst_41 = arith.constant dense<0.000000e+00> : vector<128x8xf32>
    %47 = tpu.matmul %44, %46, %cst_41 {dimension_numbers = #tpu.dot_dimension_numbers<[1], [0], [0], [1], [0, 0, 1, 1], [], []>} : vector<128x4xbf16>, vector<4x8xbf16>, vector<128x8xf32> -> vector<128x8xf32>
    %48 = arith.addf %40, %47 : vector<128x8xf32>
    %c0_42 = arith.constant 0 : index
    %c2_43 = arith.constant 2 : index
    %c0_44 = arith.constant 0 : index
    %c0_45 = arith.constant 0 : index
    %49 = vector.load %arg2[%c0_42, %c2_43, %c0_44, %c0_45] : memref<1x10x18x4xf32, #tpu.memory_space<vmem>>, vector<1x8x16x4xf32>
    %50 = vector.shape_cast %49 : vector<1x8x16x4xf32> to vector<8x16x4xf32>
    %51 = vector.shape_cast %50 : vector<8x16x4xf32> to vector<128x4xf32>
    %52 = arith.truncf %51 : vector<128x4xf32> to vector<128x4xbf16>
    %c6 = arith.constant 6 : index
    %c0_46 = arith.constant 0 : index
    %c0_47 = arith.constant 0 : index
    %53 = vector.load %arg3[%c6, %c0_46, %c0_47] : memref<9x4x8xbf16, #tpu.memory_space<vmem>>, vector<1x4x8xbf16>
    %54 = vector.shape_cast %53 : vector<1x4x8xbf16> to vector<4x8xbf16>
    %cst_48 = arith.constant dense<0.000000e+00> : vector<128x8xf32>
    %55 = tpu.matmul %52, %54, %cst_48 {dimension_numbers = #tpu.dot_dimension_numbers<[1], [0], [0], [1], [0, 0, 1, 1], [], []>} : vector<128x4xbf16>, vector<4x8xbf16>, vector<128x8xf32> -> vector<128x8xf32>
    %56 = arith.addf %48, %55 : vector<128x8xf32>
    %c0_49 = arith.constant 0 : index
    %c2_50 = arith.constant 2 : index
    %c1_51 = arith.constant 1 : index
    %c0_52 = arith.constant 0 : index
    %57 = vector.load %arg2[%c0_49, %c2_50, %c1_51, %c0_52] : memref<1x10x18x4xf32, #tpu.memory_space<vmem>>, vector<1x8x16x4xf32>
    %58 = vector.shape_cast %57 : vector<1x8x16x4xf32> to vector<8x16x4xf32>
    %59 = vector.shape_cast %58 : vector<8x16x4xf32> to vector<128x4xf32>
    %60 = arith.truncf %59 : vector<128x4xf32> to vector<128x4xbf16>
    %c7 = arith.constant 7 : index
    %c0_53 = arith.constant 0 : index
    %c0_54 = arith.constant 0 : index
    %61 = vector.load %arg3[%c7, %c0_53, %c0_54] : memref<9x4x8xbf16, #tpu.memory_space<vmem>>, vector<1x4x8xbf16>
    %62 = vector.shape_cast %61 : vector<1x4x8xbf16> to vector<4x8xbf16>
    %cst_55 = arith.constant dense<0.000000e+00> : vector<128x8xf32>
    %63 = tpu.matmul %60, %62, %cst_55 {dimension_numbers = #tpu.dot_dimension_numbers<[1], [0], [0], [1], [0, 0, 1, 1], [], []>} : vector<128x4xbf16>, vector<4x8xbf16>, vector<128x8xf32> -> vector<128x8xf32>
    %64 = arith.addf %56, %63 : vector<128x8xf32>
    %c0_56 = arith.constant 0 : index
    %c2_57 = arith.constant 2 : index
    %c2_58 = arith.constant 2 : index
    %c0_59 = arith.constant 0 : index
    %65 = vector.load %arg2[%c0_56, %c2_57, %c2_58, %c0_59] : memref<1x10x18x4xf32, #tpu.memory_space<vmem>>, vector<1x8x16x4xf32>
    %66 = vector.shape_cast %65 : vector<1x8x16x4xf32> to vector<8x16x4xf32>
    %67 = vector.shape_cast %66 : vector<8x16x4xf32> to vector<128x4xf32>
    %68 = arith.truncf %67 : vector<128x4xf32> to vector<128x4xbf16>
    %c8 = arith.constant 8 : index
    %c0_60 = arith.constant 0 : index
    %c0_61 = arith.constant 0 : index
    %69 = vector.load %arg3[%c8, %c0_60, %c0_61] : memref<9x4x8xbf16, #tpu.memory_space<vmem>>, vector<1x4x8xbf16>
    %70 = vector.shape_cast %69 : vector<1x4x8xbf16> to vector<4x8xbf16>
    %cst_62 = arith.constant dense<0.000000e+00> : vector<128x8xf32>
    %71 = tpu.matmul %68, %70, %cst_62 {dimension_numbers = #tpu.dot_dimension_numbers<[1], [0], [0], [1], [0, 0, 1, 1], [], []>} : vector<128x4xbf16>, vector<4x8xbf16>, vector<128x8xf32> -> vector<128x8xf32>
    %72 = arith.addf %64, %71 : vector<128x8xf32>
    %73 = vector.shape_cast %72 : vector<128x8xf32> to vector<1x8x16x8xf32>
    %c0_63 = arith.constant 0 : index
    %c0_64 = arith.constant 0 : index
    %c0_65 = arith.constant 0 : index
    %c0_66 = arith.constant 0 : index
    %74 = vector.load %arg4[%c0_63, %c0_64, %c0_65, %c0_66] : memref<1x8x16x8xf32, #tpu.memory_space<vmem>>, vector<1x8x16x8xf32>
    tpu.vector_store %arg4[%c0_63, %c0_64, %c0_65, %c0_66], %73 {strides = array<i32>} : memref<1x8x16x8xf32, #tpu.memory_space<vmem>>, vector<1x8x16x8xf32>,
    return
  }
  func.func @transform_0(%arg0: i32, %arg1: i32) -> (i32, i32, i32, i32) {
    %c2_i32 = arith.constant 2 : i32
    %0 = arith.muli %arg0, %c2_i32 : i32
    %1 = arith.addi %0, %arg1 : i32
    %c0_i32 = arith.constant 0 : i32
    %c0_i32_0 = arith.constant 0 : i32
    %c0_i32_1 = arith.constant 0 : i32
    %c0_i32_2 = arith.constant 0 : i32
    return %1, %c0_i32, %c0_i32_0, %c0_i32_1 : i32, i32, i32, i32
  }
  func.func @transform_1(%arg0: i32, %arg1: i32) -> (i32, i32, i32) {
    %c0_i32 = arith.constant 0 : i32
    %c0_i32_0 = arith.constant 0 : i32
    %c0_i32_1 = arith.constant 0 : i32
    %c0_i32_2 = arith.constant 0 : i32
    return %c0_i32, %c0_i32_0, %c0_i32_1 : i32, i32, i32
  }
  func.func @transform_2(%arg0: i32, %arg1: i32) -> (i32, i32, i32, i32) {
    %c0_i32 = arith.constant 0 : i32
    %c0_i32_0 = arith.constant 0 : i32
    %c0_i32_1 = arith.constant 0 : i32
    return %arg0, %arg1, %c0_i32, %c0_i32_0 : i32, i32, i32, i32
  }
}

</mosaic_0001>

<llo_original>
// kernel: tpu_custom_call.1
$region0: #{tpu_custom_call.1}
  #allocation0 [shape = 'u32[]', space=smem, size = 0x4, offset = 0x4, fixed_abs, tag = 'smem constant byte address 0x4 - core index']
  #allocation1 [shape = 'u32[144,128]{1,0:T(1,128)}', space=vmem, size = 0x12000, scoped, tag = 'internal scratch']
  %s0 = inlined_call_operand.vmem [shape: f32[4,10,18,4], index: 0, kind: input, shape index: {}]
  %s1 = inlined_call_operand.vmem [shape: bf16[9,4,8], index: 1, kind: input, shape index: {}]
  %s2 = inlined_call_operand.vmem [shape: f32[2,16,16,8], index: 2, kind: output, shape index: {}]
  %s3 = sld [smem:[#allocation0]]
  $region41: #{tpu_custom_call.1} parent=0
    _
  %s5 = ssub.s32 1, %s3
  %s6 = scalar_select 0, %s5, %s3
  loop: start=0, step=1, limit=6
  $region2: #{tpu_custom_call.1} parent=0 // loop_pre_header
    _
  $region3: #{tpu_custom_call.1} parent=0 // loop_header
    %s8 = sphi 0, %s12
    %p9 = scmp.ge.s32.totalorder %s8, 6
    %s15 = sphi 0, %s27
    %s16 = sphi 0, %s23
    %s17 = sphi 0, %s15
    %s18 = sphi 0, %s16
    %s19 = sphi 0, %s17
    %s20 = sphi 0, %s18
    %s34 = sphi 0, %s36
    %s37 = sphi 0, %s34
    %s38 = sphi 0, %s37
    %s54 = sphi 0, %s38
    %s58 = sphi 0, %s58
    %s60 = sphi 0, %s58
    %s61 = sphi 0, %s60
    %s75 = sphi 0, %s61
    %s83 = sphi 0, %s85
    %s86 = sphi 0, %s83
    %s87 = sphi 0, %s86
    %s103 = sphi 0, %s87
  $region4: #{tpu_custom_call.1} parent=0 // loop_header_branch
    %11 = sbr.rel (%p9) target = $region8
  $region5: #{tpu_custom_call.1} parent=0 // loop_body
    %s13 = ssub.s32 %s8, 1
    %s14 = ssub.s32 %s8, 2
    %s21 = sadd.s32 1, %s16
    %p22 = scmp.ge.s32.totalorder %s21, 2
    %s23 = scalar_select %p22, 0, %s21
    %s24 = sadd.s32 1, %s15
    %s25 = scalar_select %p22, %s24, %s15
    %p26 = scmp.ge.s32.totalorder %s25, 2
    %s27 = scalar_select %p26, 0, %s25
    %s28 = smul.u32 %s15, 2
    %s29 = sadd.s32 %s28, %s16
    %s30 = smul.u32 %s27, 2
    %s31 = sadd.s32 %s30, %s23
    %s32 = ssub.s32 %s29, %s31
    %p33 = scmp.eq.s32.totalorder %s32, 0
    %s35 = sadd.s32 %s34, 1
    %s36 = scalar_select %p33, %s34, %s35
    %p39 = pneg %p33
    %p40 = scmp.eq.s32.totalorder %s8, 3
    %p41 = por %p39, %p40
    %p42 = scmp.ne.s32.totalorder %s34, %s37
    %p43 = scmp.eq.s32.totalorder %s8, 0
    %p44 = por %p42, %p43
    %p45 = scmp.ne.s32.totalorder %s34, %s37
    %p46 = scmp.eq.s32.totalorder %s13, 3
    %p47 = por %p45, %p46
    %p48 = scmp.ne.s32.totalorder %s37, %s38
    %p49 = scmp.eq.s32.totalorder %s13, 0
    %p50 = por %p48, %p49
    %p51 = scmp.ne.s32.totalorder %s37, %s38
    %p52 = scmp.eq.s32.totalorder %s14, 3
    %p53 = por %p51, %p52
    %p55 = scmp.ne.s32.totalorder %s38, %s54
    %p56 = scmp.eq.s32.totalorder %s14, 0
    %p57 = por %p55, %p56
    %s59 = sadd.s32 %s58, 1
    %p62 = scmp.eq.s32.totalorder %s8, 3
    %p63 = scmp.ne.s32.totalorder %s58, %s60
    %p64 = scmp.eq.s32.totalorder %s8, 0
    %p65 = por %p63, %p64
    %p66 = scmp.ne.s32.totalorder %s58, %s60
    %p67 = scmp.eq.s32.totalorder %s13, 3
    %p68 = por %p66, %p67
    %p69 = scmp.ne.s32.totalorder %s60, %s61
    %p70 = scmp.eq.s32.totalorder %s13, 0
    %p71 = por %p69, %p70
    %p72 = scmp.ne.s32.totalorder %s60, %s61
    %p73 = scmp.eq.s32.totalorder %s14, 3
    %p74 = por %p72, %p73
    %p76 = scmp.ne.s32.totalorder %s61, %s75
    %p77 = scmp.eq.s32.totalorder %s14, 0
    %p78 = por %p76, %p77
    %s79 = ssub.s32 %s15, %s27
    %s80 = ssub.s32 %s16, %s23
    %s81 = sor.u32 %s79, %s80
    %p82 = scmp.eq.s32.totalorder %s81, 0
    %s84 = sadd.s32 %s83, 1
    %s85 = scalar_select %p82, %s83, %s84
    %p88 = pneg %p82
    %p89 = scmp.eq.s32.totalorder %s8, 3
    %p90 = por %p88, %p89
    %p91 = scmp.ne.s32.totalorder %s83, %s86
    %p92 = scmp.eq.s32.totalorder %s8, 0
    %p93 = por %p91, %p92
    %p94 = scmp.ne.s32.totalorder %s83, %s86
    %p95 = scmp.eq.s32.totalorder %s13, 3
    %p96 = por %p94, %p95
    %p97 = scmp.ne.s32.totalorder %s86, %s87
    %p98 = scmp.eq.s32.totalorder %s13, 0
    %p99 = por %p97, %p98
    %p100 = scmp.ne.s32.totalorder %s86, %s87
    %p101 = scmp.eq.s32.totalorder %s14, 3
    %p102 = por %p100, %p101
    %p104 = scmp.ne.s32.totalorder %s87, %s103
    %p105 = scmp.eq.s32.totalorder %s14, 0
    %p106 = por %p104, %p105
    %p107 = scmp.le.s32.totalorder 1, %s8
    %p108 = scmp.lt.s32.totalorder %s8, 5
    %p109 = pnand %p107, %p108
    %p110 = pneg %p109
    // Predicated region
    $region9: #{tpu_custom_call.1} parent=5 // pred_check
      _
    $region10: #{tpu_custom_call.1} parent=5 // pred_check_branch
      %112 = sbr.rel (%p109) target = $region12
    $region11: #{tpu_custom_call.1} parent=5 // pred_region
      %s113 = ssub.s32 %s8, 1
      // Predicated region
      $region13: #{tpu_custom_call.1} parent=11 // pred_check
        %p114 = pneg %p71
      $region14: #{tpu_custom_call.1} parent=11 // pred_check_branch
        %116 = sbr.rel (%p114) target = $region16
      $region15: #{tpu_custom_call.1} parent=11 // pred_region
        _
      $region16: #{tpu_custom_call.1} parent=11 // pred_fallthru
        _
    $region12: #{tpu_custom_call.1} parent=5 // pred_fallthru
      _
    %p117 = scmp.lt.s32.totalorder %s8, 4
    // Predicated region
    $region17: #{tpu_custom_call.1} parent=5 // pred_check
      %p118 = pneg %p117
    $region18: #{tpu_custom_call.1} parent=5 // pred_check_branch
      %120 = sbr.rel (%p118) target = $region20
    $region19: #{tpu_custom_call.1} parent=5 // pred_region
      // Predicated region
      $region21: #{tpu_custom_call.1} parent=19 // pred_check
        %p121 = pneg %p44
      $region22: #{tpu_custom_call.1} parent=19 // pred_check_branch
        %123 = sbr.rel (%p121) target = $region24
      $region23: #{tpu_custom_call.1} parent=19 // pred_region
        %s124 = smul.u32 %s15, 2
        %s125 = sadd.s32 %s124, %s16
        %p126 = scmp.lt.s32.totalorder %s125, 3
        %s127 = scalar_select %p126, %s125, 3
        %s128 = smul.addr %s127, 30
        %s129 = smul.addr %s128, 8
        %s130 = scalar_lea.vmem %s0, %s129
        %s131 = smul.u32 %s15, 2
        %s132 = sadd.s32 %s131, %s16
      $region24: #{tpu_custom_call.1} parent=19 // pred_fallthru
        _
    $region20: #{tpu_custom_call.1} parent=5 // pred_fallthru
      _
    %p133 = scmp.le.s32.totalorder 1, %s8
    %p134 = scmp.lt.s32.totalorder %s8, 5
    %p135 = pnand %p133, %p134
    %p136 = pneg %p135
    // Predicated region
    $region25: #{tpu_custom_call.1} parent=5 // pred_check
      _
    $region26: #{tpu_custom_call.1} parent=5 // pred_check_branch
      %138 = sbr.rel (%p135) target = $region28
    $region27: #{tpu_custom_call.1} parent=5 // pred_region
      %s139 = ssub.s32 %s8, 1
      %s140 = smul.u32 %s17, 2
      %s141 = sadd.s32 %s140, %s18
      %p142 = scmp.lt.s32.totalorder %s141, 3
      %s143 = scalar_select %p142, %s141, 3
      %s144 = smul.addr %s143, 30
      %s145 = smul.addr %s144, 8
      %s146 = scalar_lea.vmem %s0, %s145
      %p147 = pneg %p50
      %p148 = pneg %p47
      %p149 = pneg %p71
      %p150 = pneg %p68
      %p151 = pneg %p99
      %p152 = pneg %p96
      %s153 = smul.u32 8, %s18
      %p154 = scmp.lt.s32.totalorder %s17, 1
      %s155 = scalar_select %p154, %s17, 1
      %p156 = scmp.lt.s32.totalorder %s153, 15
      %s157 = scalar_select %p156, %s153, 15
      %s158 = smul.addr %s157, 2
      %s159 = smul.addr %s155, 32
      %s160 = sadd.s32 %s158, %s159
      %s161 = smul.addr %s160, 8
      %s162 = scalar_lea.vmem %s2, %s161
      %s163 = smul.u32 %s17, 2
      %s164 = sadd.s32 %s163, %s18
      %p165 = scmp.lt.s32.totalorder %s164, 3
      %s166 = scalar_select %p165, %s164, 3
      %s167 = smul.addr %s166, 30
      %s168 = smul.addr %s167, 8
      %s169 = scalar_lea.vmem %s0, %s168
      %s170 = smul.u32 %s17, 2
      %s171 = sadd.s32 %s170, %s18
      %s172 = smul.u32 8, %s18
      %p173 = scmp.lt.s32.totalorder %s17, 1
      %s174 = scalar_select %p173, %s17, 1
      %p175 = scmp.lt.s32.totalorder %s172, 15
      %s176 = scalar_select %p175, %s172, 15
      %s177 = smul.addr %s176, 2
      %s178 = smul.addr %s174, 32
      %s179 = sadd.s32 %s177, %s178
      %s180 = smul.addr %s179, 8
      %s181 = scalar_lea.vmem %s2, %s180
      %s182 = smul.u32 8, %s18
      %v184 = vld [vmem:[%s169] sm:$0xff]
      %v185 = vld [vmem:[%s169 + $0x8] sm:$0xff]
      %v186 = vld [vmem:[%s169 + $0x18] sm:$0xff]
      %v187 = vld [vmem:[%s169 + $0x20] sm:$0xff]
      %v188 = vld [vmem:[%s169 + $0x30] sm:$0xff]
      %v189 = vld [vmem:[%s169 + $0x38] sm:$0xff]
      %v190 = vld [vmem:[%s169 + $0x48] sm:$0xff]
      %v191 = vld [vmem:[%s169 + $0x50] sm:$0xff]
      %v192 = vld [vmem:[%s169 + $0x60] sm:$0xff]
      %v193 = vld [vmem:[%s169 + $0x68] sm:$0xff]
      %v194 = vld [vmem:[%s169 + $0x78] sm:$0xff]
      %v195 = vld [vmem:[%s169 + $0x80] sm:$0xff]
      %v196 = vld [vmem:[%s169 + $0x90] sm:$0xff]
      %v197 = vld [vmem:[%s169 + $0x98] sm:$0xff]
      %v198 = vld [vmem:[%s169 + $0xa8] sm:$0xff]
      %v199 = vld [vmem:[%s169 + $0xb0] sm:$0xff]
      %v200 = vpack.c.bf16 %v185, %v184
      %v201 = vpack.c.bf16 %v187, %v186
      %v202 = vpack.c.bf16 %v189, %v188
      %v203 = vpack.c.bf16 %v191, %v190
      %v204 = vpack.c.bf16 %v193, %v192
      %v205 = vpack.c.bf16 %v195, %v194
      %v206 = vpack.c.bf16 %v197, %v196
      %v207 = vpack.c.bf16 %v199, %v198
      %v208 = vld [vmem:[%s1] sm:$0x3]
      %v209 = vld [vmem:[%s169 + $0x1] sm:$0xff]
      %v210 = vld [vmem:[%s169 + $0x9] sm:$0xff]
      %v211 = vld [vmem:[%s169 + $0x19] sm:$0xff]
      %v212 = vld [vmem:[%s169 + $0x21] sm:$0xff]
      %v213 = vld [vmem:[%s169 + $0x31] sm:$0xff]
      %v214 = vld [vmem:[%s169 + $0x39] sm:$0xff]
      %v215 = vld [vmem:[%s169 + $0x49] sm:$0xff]
      %v216 = vld [vmem:[%s169 + $0x51] sm:$0xff]
      %v217 = vld [vmem:[%s169 + $0x61] sm:$0xff]
      %v218 = vld [vmem:[%s169 + $0x69] sm:$0xff]
      %v219 = vld [vmem:[%s169 + $0x79] sm:$0xff]
      %v220 = vld [vmem:[%s169 + $0x81] sm:$0xff]
      %v221 = vld [vmem:[%s169 + $0x91] sm:$0xff]
      %v222 = vld [vmem:[%s169 + $0x99] sm:$0xff]
      %v223 = vld [vmem:[%s169 + $0xa9] sm:$0xff]
      %v224 = vld [vmem:[%s169 + $0xb1] sm:$0xff]
      %v225 = vpack.c.bf16 %v210, %v209
      %v226 = vpack.c.bf16 %v212, %v211
      %v227 = vpack.c.bf16 %v214, %v213
      %v228 = vpack.c.bf16 %v216, %v215
      %v229 = vpack.c.bf16 %v218, %v217
      %v230 = vpack.c.bf16 %v220, %v219
      %v231 = vpack.c.bf16 %v222, %v221
      %v232 = vpack.c.bf16 %v224, %v223
      %s233 = scalar_lea.vmem %s1, 2
      %v234 = vld [vmem:[%s233] sm:$0x3]
      %vm235 = vcmask 31744
      %v237 = vsel %vm235, %v225, 0
      %v240 = vsel %vm235, %v226, 0
      %v243 = vsel %vm235, %v227, 0
      %v246 = vsel %vm235, %v228, 0
      %v249 = vsel %vm235, %v229, 0
      %v252 = vsel %vm235, %v230, 0
      %v255 = vsel %vm235, %v231, 0
      %v258 = vsel %vm235, %v232, 0
      %vm260 = vcmask 1041408
      %v262 = vsel %vm260, %v234, 0
      %264 = vmatprep.subr.bf16.mxu0 0
      %265 = vmatpush1.bf16.msra.mxu0 %v262
      %266 = vmatprep.subr.bf16.mxu0 0
      %267 = vmatpush1.bf16.msra.mxu0 0
      %268 = vmatprep.subr.bf16.mxu0 0
      %269 = vmatpush1.bf16.msra.mxu0 0
      %270 = vmatprep.subr.bf16.mxu0 0
      %271 = vmatpush1.bf16.msra.mxu0 0
      %272 = vmatprep.subr.bf16.mxu0 0
      %273 = vmatpush1.bf16.msra.mxu0 0
      %274 = vmatprep.subr.bf16.mxu0 0
      %275 = vmatpush1.bf16.msra.mxu0 0
      %276 = vmatprep.subr.bf16.mxu0 0
      %277 = vmatpush1.bf16.msra.mxu0 0
      %278 = vmatprep.subr.bf16.mxu0 0
      %279 = vmatpush1.bf16.msra.mxu0 0
      %280 = vmatprep.subr.bf16.mxu0 0
      %281 = vmatpush1.bf16.msra.mxu0 0
      %282 = vmatprep.subr.bf16.mxu0 0
      %283 = vmatpush1.bf16.msra.mxu0 0
      %284 = vmatprep.subr.bf16.mxu0 0
      %285 = vmatpush1.bf16.msra.mxu0 0
      %286 = vmatprep.subr.bf16.mxu0 0
      %287 = vmatpush1.bf16.msra.mxu0 0
      %288 = vmatprep.subr.bf16.mxu0 0
      %289 = vmatpush1.bf16.msra.mxu0 0
      %290 = vmatprep.subr.bf16.mxu0 0
      %291 = vmatpush1.bf16.msra.mxu0 0
      %292 = vmatprep.subr.bf16.mxu0 0
      %293 = vmatpush1.bf16.msra.mxu0 0
      %294 = vmatprep.subr.bf16.mxu0 0
      %295 = vmatpush1.bf16.msra.mxu0 0
      %296 = vmatprep.mubr.bf16.mxu0 0
      %297 = vmatmul.mubr.bf16.gmra.mrb[0].mxu0 %v237
      %v298 = vpop.f32.mrb[0].mxu0
      %v299 = vadd.f32 0.0, %v298
      %v300 = vpop.f32.mrb[0].mxu0
      %v301 = vpop.f32.mrb[0].mxu0
      %v302 = vadd.f32 0.0, %v301
      %v303 = vpop.f32.mrb[0].mxu0
      %304 = vmatprep.mubr.bf16.mxu0 0
      %305 = vmatmul.mubr.bf16.gmra.mrb[0].mxu0 %v240
      %v306 = vpop.f32.mrb[0].mxu0
      %v307 = vadd.f32 0.0, %v306
      %v308 = vpop.f32.mrb[0].mxu0
      %v309 = vpop.f32.mrb[0].mxu0
      %v310 = vadd.f32 0.0, %v309
      %v311 = vpop.f32.mrb[0].mxu0
      %312 = vmatprep.mubr.bf16.mxu0 0
      %313 = vmatmul.mubr.bf16.gmra.mrb[0].mxu0 %v243
      %v314 = vpop.f32.mrb[0].mxu0
      %v315 = vadd.f32 0.0, %v314
      %v316 = vpop.f32.mrb[0].mxu0
      %v317 = vpop.f32.mrb[0].mxu0
      %v318 = vadd.f32 0.0, %v317
      %v319 = vpop.f32.mrb[0].mxu0
      %320 = vmatprep.mubr.bf16.mxu0 0
      %321 = vmatmul.mubr.bf16.gmra.mrb[0].mxu0 %v246
      %v322 = vpop.f32.mrb[0].mxu0
      %v323 = vadd.f32 0.0, %v322
      %v324 = vpop.f32.mrb[0].mxu0
      %v325 = vpop.f32.mrb[0].mxu0
      %v326 = vadd.f32 0.0, %v325
      %v327 = vpop.f32.mrb[0].mxu0
      %328 = vmatprep.mubr.bf16.mxu0 0
      %329 = vmatmul.mubr.bf16.gmra.mrb[0].mxu0 %v249
      %v330 = vpop.f32.mrb[0].mxu0
      %v331 = vadd.f32 0.0, %v330
      %v332 = vpop.f32.mrb[0].mxu0
      %v333 = vpop.f32.mrb[0].mxu0
      %v334 = vadd.f32 0.0, %v333
      %v335 = vpop.f32.mrb[0].mxu0
      %336 = vmatprep.mubr.bf16.mxu0 0
      %337 = vmatmul.mubr.bf16.gmra.mrb[0].mxu0 %v252
      %v338 = vpop.f32.mrb[0].mxu0
      %v339 = vadd.f32 0.0, %v338
      %v340 = vpop.f32.mrb[0].mxu0
      %v341 = vpop.f32.mrb[0].mxu0
      %v342 = vadd.f32 0.0, %v341
      %v343 = vpop.f32.mrb[0].mxu0
      %344 = vmatprep.mubr.bf16.mxu0 0
      %345 = vmatmul.mubr.bf16.gmra.mrb[0].mxu0 %v255
      %v346 = vpop.f32.mrb[0].mxu0
      %v347 = vadd.f32 0.0, %v346
      %v348 = vpop.f32.mrb[0].mxu0
      %v349 = vpop.f32.mrb[0].mxu0
      %v350 = vadd.f32 0.0, %v349
      %v351 = vpop.f32.mrb[0].mxu0
      %352 = vmatprep.mubr.bf16.mxu0 0
      %353 = vmatmul.mubr.bf16.gmra.mrb[0].mxu0 %v258
      %v354 = vpop.f32.mrb[0].mxu0
      %v355 = vadd.f32 0.0, %v354
      %v356 = vpop.f32.mrb[0].mxu0
      %v357 = vpop.f32.mrb[0].mxu0
      %v358 = vadd.f32 0.0, %v357
      %v359 = vpop.f32.mrb[0].mxu0
      %360 = vdwg.mxu0
      %v362 = vsel %vm235, %v200, 0
      %v365 = vsel %vm235, %v201, 0
      %v368 = vsel %vm235, %v202, 0
      %v371 = vsel %vm235, %v203, 0
      %v374 = vsel %vm235, %v204, 0
      %v377 = vsel %vm235, %v205, 0
      %v380 = vsel %vm235, %v206, 0
      %v383 = vsel %vm235, %v207, 0
      %v386 = vsel %vm260, %v208, 0
      %388 = vmatprep.subr.bf16.mxu0 0
      %389 = vmatpush1.bf16.msra.mxu0 %v386
      %390 = vmatprep.subr.bf16.mxu0 0
      %391 = vmatpush1.bf16.msra.mxu0 0
      %392 = vmatprep.subr.bf16.mxu0 0
      %393 = vmatpush1.bf16.msra.mxu0 0
      %394 = vmatprep.subr.bf16.mxu0 0
      %395 = vmatpush1.bf16.msra.mxu0 0
      %396 = vmatprep.subr.bf16.mxu0 0
      %397 = vmatpush1.bf16.msra.mxu0 0
      %398 = vmatprep.subr.bf16.mxu0 0
      %399 = vmatpush1.bf16.msra.mxu0 0
      %400 = vmatprep.subr.bf16.mxu0 0
      %401 = vmatpush1.bf16.msra.mxu0 0
      %402 = vmatprep.subr.bf16.mxu0 0
      %403 = vmatpush1.bf16.msra.mxu0 0
      %404 = vmatprep.subr.bf16.mxu0 0
      %405 = vmatpush1.bf16.msra.mxu0 0
      %406 = vmatprep.subr.bf16.mxu0 0
      %407 = vmatpush1.bf16.msra.mxu0 0
      %408 = vmatprep.subr.bf16.mxu0 0
      %409 = vmatpush1.bf16.msra.mxu0 0
      %410 = vmatprep.subr.bf16.mxu0 0
      %411 = vmatpush1.bf16.msra.mxu0 0
      %412 = vmatprep.subr.bf16.mxu0 0
      %413 = vmatpush1.bf16.msra.mxu0 0
      %414 = vmatprep.subr.bf16.mxu0 0
      %415 = vmatpush1.bf16.msra.mxu0 0
      %416 = vmatprep.subr.bf16.mxu0 0
      %417 = vmatpush1.bf16.msra.mxu0 0
      %418 = vmatprep.subr.bf16.mxu0 0
      %419 = vmatpush1.bf16.msra.mxu0 0
      %420 = vmatprep.mubr.bf16.mxu0 0
      %421 = vmatmul.mubr.bf16.gmra.mrb[0].mxu0 %v362
      %v422 = vpop.f32.mrb[0].mxu0
      %v423 = vadd.f32 %v299, %v422
      %v424 = vpop.f32.mrb[0].mxu0
      %v425 = vpop.f32.mrb[0].mxu0
      %v426 = vadd.f32 %v302, %v425
      %v427 = vpop.f32.mrb[0].mxu0
      %428 = vmatprep.mubr.bf16.mxu0 0
      %429 = vmatmul.mubr.bf16.gmra.mrb[0].mxu0 %v365
      %v430 = vpop.f32.mrb[0].mxu0
      %v431 = vadd.f32 %v307, %v430
      %v432 = vpop.f32.mrb[0].mxu0
      %v433 = vpop.f32.mrb[0].mxu0
      %v434 = vadd.f32 %v310, %v433
      %v435 = vpop.f32.mrb[0].mxu0
      %436 = vmatprep.mubr.bf16.mxu0 0
      %437 = vmatmul.mubr.bf16.gmra.mrb[0].mxu0 %v368
      %v438 = vpop.f32.mrb[0].mxu0
      %v439 = vadd.f32 %v315, %v438
      %v440 = vpop.f32.mrb[0].mxu0
      %v441 = vpop.f32.mrb[0].mxu0
      %v442 = vadd.f32 %v318, %v441
      %v443 = vpop.f32.mrb[0].mxu0
      %444 = vmatprep.mubr.bf16.mxu0 0
      %445 = vmatmul.mubr.bf16.gmra.mrb[0].mxu0 %v371
      %v446 = vpop.f32.mrb[0].mxu0
      %v447 = vadd.f32 %v323, %v446
      %v448 = vpop.f32.mrb[0].mxu0
      %v449 = vpop.f32.mrb[0].mxu0
      %v450 = vadd.f32 %v326, %v449
      %v451 = vpop.f32.mrb[0].mxu0
      %452 = vmatprep.mubr.bf16.mxu0 0
      %453 = vmatmul.mubr.bf16.gmra.mrb[0].mxu0 %v374
      %v454 = vpop.f32.mrb[0].mxu0
      %v455 = vadd.f32 %v331, %v454
      %v456 = vpop.f32.mrb[0].mxu0
      %v457 = vpop.f32.mrb[0].mxu0
      %v458 = vadd.f32 %v334, %v457
      %v459 = vpop.f32.mrb[0].mxu0
      %460 = vmatprep.mubr.bf16.mxu0 0
      %461 = vmatmul.mubr.bf16.gmra.mrb[0].mxu0 %v377
      %v462 = vpop.f32.mrb[0].mxu0
      %v463 = vadd.f32 %v339, %v462
      %v464 = vpop.f32.mrb[0].mxu0
      %v465 = vpop.f32.mrb[0].mxu0
      %v466 = vadd.f32 %v342, %v465
      %v467 = vpop.f32.mrb[0].mxu0
      %468 = vmatprep.mubr.bf16.mxu0 0
      %469 = vmatmul.mubr.bf16.gmra.mrb[0].mxu0 %v380
      %v470 = vpop.f32.mrb[0].mxu0
      %v471 = vadd.f32 %v347, %v470
      %v472 = vpop.f32.mrb[0].mxu0
      %v473 = vpop.f32.mrb[0].mxu0
      %v474 = vadd.f32 %v350, %v473
      %v475 = vpop.f32.mrb[0].mxu0
      %476 = vmatprep.mubr.bf16.mxu0 0
      %477 = vmatmul.mubr.bf16.gmra.mrb[0].mxu0 %v383
      %v478 = vpop.f32.mrb[0].mxu0
      %v479 = vadd.f32 %v355, %v478
      %v480 = vpop.f32.mrb[0].mxu0
      %v481 = vpop.f32.mrb[0].mxu0
      %v482 = vadd.f32 %v358, %v481
      %v483 = vpop.f32.mrb[0].mxu0
      %484 = vdwg.mxu0
      %v485 = vld [vmem:[%s169 + $0x2] sm:$0xff]
      %v486 = vld [vmem:[%s169 + $0xa] sm:$0xff]
      %v487 = vld [vmem:[%s169 + $0x1a] sm:$0xff]
      %v488 = vld [vmem:[%s169 + $0x22] sm:$0xff]
      %v489 = vld [vmem:[%s169 + $0x32] sm:$0xff]
      %v490 = vld [vmem:[%s169 + $0x3a] sm:$0xff]
      %v491 = vld [vmem:[%s169 + $0x4a] sm:$0xff]
      %v492 = vld [vmem:[%s169 + $0x52] sm:$0xff]
      %v493 = vld [vmem:[%s169 + $0x62] sm:$0xff]
      %v494 = vld [vmem:[%s169 + $0x6a] sm:$0xff]
      %v495 = vld [vmem:[%s169 + $0x7a] sm:$0xff]
      %v496 = vld [vmem:[%s169 + $0x82] sm:$0xff]
      %v497 = vld [vmem:[%s169 + $0x92] sm:$0xff]
      %v498 = vld [vmem:[%s169 + $0x9a] sm:$0xff]
      %v499 = vld [vmem:[%s169 + $0xaa] sm:$0xff]
      %v500 = vld [vmem:[%s169 + $0xb2] sm:$0xff]
      %v501 = vpack.c.bf16 %v486, %v485
      %v502 = vpack.c.bf16 %v488, %v487
      %v503 = vpack.c.bf16 %v490, %v489
      %v504 = vpack.c.bf16 %v492, %v491
      %v505 = vpack.c.bf16 %v494, %v493
      %v506 = vpack.c.bf16 %v496, %v495
      %v507 = vpack.c.bf16 %v498, %v497
      %v508 = vpack.c.bf16 %v500, %v499
      %s509 = scalar_lea.vmem %s1, 4
      %v510 = vld [vmem:[%s509] sm:$0x3]
      %v512 = vsel %vm235, %v501, 0
      %v515 = vsel %vm235, %v502, 0
      %v518 = vsel %vm235, %v503, 0
      %v521 = vsel %vm235, %v504, 0
      %v524 = vsel %vm235, %v505, 0
      %v527 = vsel %vm235, %v506, 0
      %v530 = vsel %vm235, %v507, 0
      %v533 = vsel %vm235, %v508, 0
      %v536 = vsel %vm260, %v510, 0
      %538 = vmatprep.subr.bf16.mxu0 0
      %539 = vmatpush1.bf16.msra.mxu0 %v536
      %540 = vmatprep.subr.bf16.mxu0 0
      %541 = vmatpush1.bf16.msra.mxu0 0
      %542 = vmatprep.subr.bf16.mxu0 0
      %543 = vmatpush1.bf16.msra.mxu0 0
      %544 = vmatprep.subr.bf16.mxu0 0
      %545 = vmatpush1.bf16.msra.mxu0 0
      %546 = vmatprep.subr.bf16.mxu0 0
      %547 = vmatpush1.bf16.msra.mxu0 0
      %548 = vmatprep.subr.bf16.mxu0 0
      %549 = vmatpush1.bf16.msra.mxu0 0
      %550 = vmatprep.subr.bf16.mxu0 0
      %551 = vmatpush1.bf16.msra.mxu0 0
      %552 = vmatprep.subr.bf16.mxu0 0
      %553 = vmatpush1.bf16.msra.mxu0 0
      %554 = vmatprep.subr.bf16.mxu0 0
      %555 = vmatpush1.bf16.msra.mxu0 0
      %556 = vmatprep.subr.bf16.mxu0 0
      %557 = vmatpush1.bf16.msra.mxu0 0
      %558 = vmatprep.subr.bf16.mxu0 0
      %559 = vmatpush1.bf16.msra.mxu0 0
      %560 = vmatprep.subr.bf16.mxu0 0
      %561 = vmatpush1.bf16.msra.mxu0 0
      %562 = vmatprep.subr.bf16.mxu0 0
      %563 = vmatpush1.bf16.msra.mxu0 0
      %564 = vmatprep.subr.bf16.mxu0 0
      %565 = vmatpush1.bf16.msra.mxu0 0
      %566 = vmatprep.subr.bf16.mxu0 0
      %567 = vmatpush1.bf16.msra.mxu0 0
      %568 = vmatprep.subr.bf16.mxu0 0
      %569 = vmatpush1.bf16.msra.mxu0 0
      %570 = vmatprep.mubr.bf16.mxu0 0
      %571 = vmatmul.mubr.bf16.gmra.mrb[0].mxu0 %v512
      %v572 = vpop.f32.mrb[0].mxu0
      %v573 = vadd.f32 0.0, %v572
      %v574 = vpop.f32.mrb[0].mxu0
      %v575 = vpop.f32.mrb[0].mxu0
      %v576 = vadd.f32 0.0, %v575
      %v577 = vpop.f32.mrb[0].mxu0
      %578 = vmatprep.mubr.bf16.mxu0 0
      %579 = vmatmul.mubr.bf16.gmra.mrb[0].mxu0 %v515
      %v580 = vpop.f32.mrb[0].mxu0
      %v581 = vadd.f32 0.0, %v580
      %v582 = vpop.f32.mrb[0].mxu0
      %v583 = vpop.f32.mrb[0].mxu0
      %v584 = vadd.f32 0.0, %v583
      %v585 = vpop.f32.mrb[0].mxu0
      %586 = vmatprep.mubr.bf16.mxu0 0
      %587 = vmatmul.mubr.bf16.gmra.mrb[0].mxu0 %v518
      %v588 = vpop.f32.mrb[0].mxu0
      %v589 = vadd.f32 0.0, %v588
      %v590 = vpop.f32.mrb[0].mxu0
      %v591 = vpop.f32.mrb[0].mxu0
      %v592 = vadd.f32 0.0, %v591
      %v593 = vpop.f32.mrb[0].mxu0
      %594 = vmatprep.mubr.bf16.mxu0 0
      %595 = vmatmul.mubr.bf16.gmra.mrb[0].mxu0 %v521
      %v596 = vpop.f32.mrb[0].mxu0
      %v597 = vadd.f32 0.0, %v596
      %v598 = vpop.f32.mrb[0].mxu0
      %v599 = vpop.f32.mrb[0].mxu0
      %v600 = vadd.f32 0.0, %v599
      %v601 = vpop.f32.mrb[0].mxu0
      %602 = vmatprep.mubr.bf16.mxu0 0
      %603 = vmatmul.mubr.bf16.gmra.mrb[0].mxu0 %v524
      %v604 = vpop.f32.mrb[0].mxu0
      %v605 = vadd.f32 0.0, %v604
      %v606 = vpop.f32.mrb[0].mxu0
      %v607 = vpop.f32.mrb[0].mxu0
      %v608 = vadd.f32 0.0, %v607
      %v609 = vpop.f32.mrb[0].mxu0
      %610 = vmatprep.mubr.bf16.mxu0 0
      %611 = vmatmul.mubr.bf16.gmra.mrb[0].mxu0 %v527
      %v612 = vpop.f32.mrb[0].mxu0
      %v613 = vadd.f32 0.0, %v612
      %v614 = vpop.f32.mrb[0].mxu0
      %v615 = vpop.f32.mrb[0].mxu0
      %v616 = vadd.f32 0.0, %v615
      %v617 = vpop.f32.mrb[0].mxu0
      %618 = vmatprep.mubr.bf16.mxu0 0
      %619 = vmatmul.mubr.bf16.gmra.mrb[0].mxu0 %v530
      %v620 = vpop.f32.mrb[0].mxu0
      %v621 = vadd.f32 0.0, %v620
      %v622 = vpop.f32.mrb[0].mxu0
      %v623 = vpop.f32.mrb[0].mxu0
      %v624 = vadd.f32 0.0, %v623
      %v625 = vpop.f32.mrb[0].mxu0
      %626 = vmatprep.mubr.bf16.mxu0 0
      %627 = vmatmul.mubr.bf16.gmra.mrb[0].mxu0 %v533
      %v628 = vpop.f32.mrb[0].mxu0
      %v629 = vadd.f32 0.0, %v628
      %v630 = vpop.f32.mrb[0].mxu0
      %v631 = vpop.f32.mrb[0].mxu0
      %v632 = vadd.f32 0.0, %v631
      %v633 = vpop.f32.mrb[0].mxu0
      %634 = vdwg.mxu0
      %v635 = vadd.f32 %v423, %v573
      %v636 = vadd.f32 %v426, %v576
      %v637 = vadd.f32 %v431, %v581
      %v638 = vadd.f32 %v434, %v584
      %v639 = vadd.f32 %v439, %v589
      %v640 = vadd.f32 %v442, %v592
      %v641 = vadd.f32 %v447, %v597
      %v642 = vadd.f32 %v450, %v600
      %v643 = vadd.f32 %v455, %v605
      %v644 = vadd.f32 %v458, %v608
      %v645 = vadd.f32 %v463, %v613
      %v646 = vadd.f32 %v466, %v616
      %v647 = vadd.f32 %v471, %v621
      %v648 = vadd.f32 %v474, %v624
      %v649 = vadd.f32 %v479, %v629
      %v650 = vadd.f32 %v482, %v632
      %s651 = scalar_lea.vmem %s169, 24
      %v652 = vld [vmem:[%s651] sm:$0xff]
      %v653 = vld [vmem:[%s651 + $0x8] sm:$0xff]
      %v654 = vld [vmem:[%s651 + $0x18] sm:$0xff]
      %v655 = vld [vmem:[%s651 + $0x20] sm:$0xff]
      %v656 = vld [vmem:[%s651 + $0x30] sm:$0xff]
      %v657 = vld [vmem:[%s651 + $0x38] sm:$0xff]
      %v658 = vld [vmem:[%s651 + $0x48] sm:$0xff]
      %v659 = vld [vmem:[%s651 + $0x50] sm:$0xff]
      %v660 = vld [vmem:[%s651 + $0x60] sm:$0xff]
      %v661 = vld [vmem:[%s651 + $0x68] sm:$0xff]
      %v662 = vld [vmem:[%s651 + $0x78] sm:$0xff]
      %v663 = vld [vmem:[%s651 + $0x80] sm:$0xff]
      %v664 = vld [vmem:[%s651 + $0x90] sm:$0xff]
      %v665 = vld [vmem:[%s651 + $0x98] sm:$0xff]
      %v666 = vld [vmem:[%s651 + $0xa8] sm:$0xff]
      %v667 = vld [vmem:[%s651 + $0xb0] sm:$0xff]
      %v668 = vpack.c.bf16 %v653, %v652
      %v669 = vpack.c.bf16 %v655, %v654
      %v670 = vpack.c.bf16 %v657, %v656
      %v671 = vpack.c.bf16 %v659, %v658
      %v672 = vpack.c.bf16 %v661, %v660
      %v673 = vpack.c.bf16 %v663, %v662
      %v674 = vpack.c.bf16 %v665, %v664
      %v675 = vpack.c.bf16 %v667, %v666
      %s676 = scalar_lea.vmem %s1, 6
      %v677 = vld [vmem:[%s676] sm:$0x3]
      %v679 = vsel %vm235, %v668, 0
      %v682 = vsel %vm235, %v669, 0
      %v685 = vsel %vm235, %v670, 0
      %v688 = vsel %vm235, %v671, 0
      %v691 = vsel %vm235, %v672, 0
      %v694 = vsel %vm235, %v673, 0
      %v697 = vsel %vm235, %v674, 0
      %v700 = vsel %vm235, %v675, 0
      %v703 = vsel %vm260, %v677, 0
      %705 = vmatprep.subr.bf16.mxu0 0
      %706 = vmatpush1.bf16.msra.mxu0 %v703
      %707 = vmatprep.subr.bf16.mxu0 0
      %708 = vmatpush1.bf16.msra.mxu0 0
      %709 = vmatprep.subr.bf16.mxu0 0
      %710 = vmatpush1.bf16.msra.mxu0 0
      %711 = vmatprep.subr.bf16.mxu0 0
      %712 = vmatpush1.bf16.msra.mxu0 0
      %713 = vmatprep.subr.bf16.mxu0 0
      %714 = vmatpush1.bf16.msra.mxu0 0
      %715 = vmatprep.subr.bf16.mxu0 0
      %716 = vmatpush1.bf16.msra.mxu0 0
      %717 = vmatprep.subr.bf16.mxu0 0
      %718 = vmatpush1.bf16.msra.mxu0 0
      %719 = vmatprep.subr.bf16.mxu0 0
      %720 = vmatpush1.bf16.msra.mxu0 0
      %721 = vmatprep.subr.bf16.mxu0 0
      %722 = vmatpush1.bf16.msra.mxu0 0
      %723 = vmatprep.subr.bf16.mxu0 0
      %724 = vmatpush1.bf16.msra.mxu0 0
      %725 = vmatprep.subr.bf16.mxu0 0
      %726 = vmatpush1.bf16.msra.mxu0 0
      %727 = vmatprep.subr.bf16.mxu0 0
      %728 = vmatpush1.bf16.msra.mxu0 0
      %729 = vmatprep.subr.bf16.mxu0 0
      %730 = vmatpush1.bf16.msra.mxu0 0
      %731 = vmatprep.subr.bf16.mxu0 0
      %732 = vmatpush1.bf16.msra.mxu0 0
      %733 = vmatprep.subr.bf16.mxu0 0
      %734 = vmatpush1.bf16.msra.mxu0 0
      %735 = vmatprep.subr.bf16.mxu0 0
      %736 = vmatpush1.bf16.msra.mxu0 0
      %737 = vmatprep.mubr.bf16.mxu0 0
      %738 = vmatmul.mubr.bf16.gmra.mrb[0].mxu0 %v679
      %v739 = vpop.f32.mrb[0].mxu0
      %v740 = vadd.f32 0.0, %v739
      %v741 = vpop.f32.mrb[0].mxu0
      %v742 = vpop.f32.mrb[0].mxu0
      %v743 = vadd.f32 0.0, %v742
      %v744 = vpop.f32.mrb[0].mxu0
      %745 = vmatprep.mubr.bf16.mxu0 0
      %746 = vmatmul.mubr.bf16.gmra.mrb[0].mxu0 %v682
      %v747 = vpop.f32.mrb[0].mxu0
      %v748 = vadd.f32 0.0, %v747
      %v749 = vpop.f32.mrb[0].mxu0
      %v750 = vpop.f32.mrb[0].mxu0
      %v751 = vadd.f32 0.0, %v750
      %v752 = vpop.f32.mrb[0].mxu0
      %753 = vmatprep.mubr.bf16.mxu0 0
      %754 = vmatmul.mubr.bf16.gmra.mrb[0].mxu0 %v685
      %v755 = vpop.f32.mrb[0].mxu0
      %v756 = vadd.f32 0.0, %v755
      %v757 = vpop.f32.mrb[0].mxu0
      %v758 = vpop.f32.mrb[0].mxu0
      %v759 = vadd.f32 0.0, %v758
      %v760 = vpop.f32.mrb[0].mxu0
      %761 = vmatprep.mubr.bf16.mxu0 0
      %762 = vmatmul.mubr.bf16.gmra.mrb[0].mxu0 %v688
      %v763 = vpop.f32.mrb[0].mxu0
      %v764 = vadd.f32 0.0, %v763
      %v765 = vpop.f32.mrb[0].mxu0
      %v766 = vpop.f32.mrb[0].mxu0
      %v767 = vadd.f32 0.0, %v766
      %v768 = vpop.f32.mrb[0].mxu0
      %769 = vmatprep.mubr.bf16.mxu0 0
      %770 = vmatmul.mubr.bf16.gmra.mrb[0].mxu0 %v691
      %v771 = vpop.f32.mrb[0].mxu0
      %v772 = vadd.f32 0.0, %v771
      %v773 = vpop.f32.mrb[0].mxu0
      %v774 = vpop.f32.mrb[0].mxu0
      %v775 = vadd.f32 0.0, %v774
      %v776 = vpop.f32.mrb[0].mxu0
      %777 = vmatprep.mubr.bf16.mxu0 0
      %778 = vmatmul.mubr.bf16.gmra.mrb[0].mxu0 %v694
      %v779 = vpop.f32.mrb[0].mxu0
      %v780 = vadd.f32 0.0, %v779
      %v781 = vpop.f32.mrb[0].mxu0
      %v782 = vpop.f32.mrb[0].mxu0
      %v783 = vadd.f32 0.0, %v782
      %v784 = vpop.f32.mrb[0].mxu0
      %785 = vmatprep.mubr.bf16.mxu0 0
      %786 = vmatmul.mubr.bf16.gmra.mrb[0].mxu0 %v697
      %v787 = vpop.f32.mrb[0].mxu0
      %v788 = vadd.f32 0.0, %v787
      %v789 = vpop.f32.mrb[0].mxu0
      %v790 = vpop.f32.mrb[0].mxu0
      %v791 = vadd.f32 0.0, %v790
      %v792 = vpop.f32.mrb[0].mxu0
      %793 = vmatprep.mubr.bf16.mxu0 0
      %794 = vmatmul.mubr.bf16.gmra.mrb[0].mxu0 %v700
      %v795 = vpop.f32.mrb[0].mxu0
      %v796 = vadd.f32 0.0, %v795
      %v797 = vpop.f32.mrb[0].mxu0
      %v798 = vpop.f32.mrb[0].mxu0
      %v799 = vadd.f32 0.0, %v798
      %v800 = vpop.f32.mrb[0].mxu0
      %801 = vdwg.mxu0
      %v802 = vadd.f32 %v635, %v740
      %v803 = vadd.f32 %v636, %v743
      %v804 = vadd.f32 %v637, %v748
      %v805 = vadd.f32 %v638, %v751
      %v806 = vadd.f32 %v639, %v756
      %v807 = vadd.f32 %v640, %v759
      %v808 = vadd.f32 %v641, %v764
      %v809 = vadd.f32 %v642, %v767
      %v810 = vadd.f32 %v643, %v772
      %v811 = vadd.f32 %v644, %v775
      %v812 = vadd.f32 %v645, %v780
      %v813 = vadd.f32 %v646, %v783
      %v814 = vadd.f32 %v647, %v788
      %v815 = vadd.f32 %v648, %v791
      %v816 = vadd.f32 %v649, %v796
      %v817 = vadd.f32 %v650, %v799
      %v818 = vld [vmem:[%s651 + $0x1] sm:$0xff]
      %v819 = vld [vmem:[%s651 + $0x9] sm:$0xff]
      %v820 = vld [vmem:[%s651 + $0x19] sm:$0xff]
      %v821 = vld [vmem:[%s651 + $0x21] sm:$0xff]
      %v822 = vld [vmem:[%s651 + $0x31] sm:$0xff]
      %v823 = vld [vmem:[%s651 + $0x39] sm:$0xff]
      %v824 = vld [vmem:[%s651 + $0x49] sm:$0xff]
      %v825 = vld [vmem:[%s651 + $0x51] sm:$0xff]
      %v826 = vld [vmem:[%s651 + $0x61] sm:$0xff]
      %v827 = vld [vmem:[%s651 + $0x69] sm:$0xff]
      %v828 = vld [vmem:[%s651 + $0x79] sm:$0xff]
      %v829 = vld [vmem:[%s651 + $0x81] sm:$0xff]
      %v830 = vld [vmem:[%s651 + $0x91] sm:$0xff]
      %v831 = vld [vmem:[%s651 + $0x99] sm:$0xff]
      %v832 = vld [vmem:[%s651 + $0xa9] sm:$0xff]
      %v833 = vld [vmem:[%s651 + $0xb1] sm:$0xff]
      %v834 = vpack.c.bf16 %v819, %v818
      %v835 = vpack.c.bf16 %v821, %v820
      %v836 = vpack.c.bf16 %v823, %v822
      %v837 = vpack.c.bf16 %v825, %v824
      %v838 = vpack.c.bf16 %v827, %v826
      %v839 = vpack.c.bf16 %v829, %v828
      %v840 = vpack.c.bf16 %v831, %v830
      %v841 = vpack.c.bf16 %v833, %v832
      %s842 = scalar_lea.vmem %s1, 8
      %v843 = vld [vmem:[%s842] sm:$0x3]
      %v845 = vsel %vm235, %v834, 0
      %v848 = vsel %vm235, %v835, 0
      %v851 = vsel %vm235, %v836, 0
      %v854 = vsel %vm235, %v837, 0
      %v857 = vsel %vm235, %v838, 0
      %v860 = vsel %vm235, %v839, 0
      %v863 = vsel %vm235, %v840, 0
      %v866 = vsel %vm235, %v841, 0
      %v869 = vsel %vm260, %v843, 0
      %871 = vmatprep.subr.bf16.mxu0 0
      %872 = vmatpush1.bf16.msra.mxu0 %v869
      %873 = vmatprep.subr.bf16.mxu0 0
      %874 = vmatpush1.bf16.msra.mxu0 0
      %875 = vmatprep.subr.bf16.mxu0 0
      %876 = vmatpush1.bf16.msra.mxu0 0
      %877 = vmatprep.subr.bf16.mxu0 0
      %878 = vmatpush1.bf16.msra.mxu0 0
      %879 = vmatprep.subr.bf16.mxu0 0
      %880 = vmatpush1.bf16.msra.mxu0 0
      %881 = vmatprep.subr.bf16.mxu0 0
      %882 = vmatpush1.bf16.msra.mxu0 0
      %883 = vmatprep.subr.bf16.mxu0 0
      %884 = vmatpush1.bf16.msra.mxu0 0
      %885 = vmatprep.subr.bf16.mxu0 0
      %886 = vmatpush1.bf16.msra.mxu0 0
      %887 = vmatprep.subr.bf16.mxu0 0
      %888 = vmatpush1.bf16.msra.mxu0 0
      %889 = vmatprep.subr.bf16.mxu0 0
      %890 = vmatpush1.bf16.msra.mxu0 0
      %891 = vmatprep.subr.bf16.mxu0 0
      %892 = vmatpush1.bf16.msra.mxu0 0
      %893 = vmatprep.subr.bf16.mxu0 0
      %894 = vmatpush1.bf16.msra.mxu0 0
      %895 = vmatprep.subr.bf16.mxu0 0
      %896 = vmatpush1.bf16.msra.mxu0 0
      %897 = vmatprep.subr.bf16.mxu0 0
      %898 = vmatpush1.bf16.msra.mxu0 0
      %899 = vmatprep.subr.bf16.mxu0 0
      %900 = vmatpush1.bf16.msra.mxu0 0
      %901 = vmatprep.subr.bf16.mxu0 0
      %902 = vmatpush1.bf16.msra.mxu0 0
      %903 = vmatprep.mubr.bf16.mxu0 0
      %904 = vmatmul.mubr.bf16.gmra.mrb[0].mxu0 %v845
      %v905 = vpop.f32.mrb[0].mxu0
      %v906 = vadd.f32 0.0, %v905
      %v907 = vpop.f32.mrb[0].mxu0
      %v908 = vpop.f32.mrb[0].mxu0
      %v909 = vadd.f32 0.0, %v908
      %v910 = vpop.f32.mrb[0].mxu0
      %911 = vmatprep.mubr.bf16.mxu0 0
      %912 = vmatmul.mubr.bf16.gmra.mrb[0].mxu0 %v848
      %v913 = vpop.f32.mrb[0].mxu0
      %v914 = vadd.f32 0.0, %v913
      %v915 = vpop.f32.mrb[0].mxu0
      %v916 = vpop.f32.mrb[0].mxu0
      %v917 = vadd.f32 0.0, %v916
      %v918 = vpop.f32.mrb[0].mxu0
      %919 = vmatprep.mubr.bf16.mxu0 0
      %920 = vmatmul.mubr.bf16.gmra.mrb[0].mxu0 %v851
      %v921 = vpop.f32.mrb[0].mxu0
      %v922 = vadd.f32 0.0, %v921
      %v923 = vpop.f32.mrb[0].mxu0
      %v924 = vpop.f32.mrb[0].mxu0
      %v925 = vadd.f32 0.0, %v924
      %v926 = vpop.f32.mrb[0].mxu0
      %927 = vmatprep.mubr.bf16.mxu0 0
      %928 = vmatmul.mubr.bf16.gmra.mrb[0].mxu0 %v854
      %v929 = vpop.f32.mrb[0].mxu0
      %v930 = vadd.f32 0.0, %v929
      %v931 = vpop.f32.mrb[0].mxu0
      %v932 = vpop.f32.mrb[0].mxu0
      %v933 = vadd.f32 0.0, %v932
      %v934 = vpop.f32.mrb[0].mxu0
      %935 = vmatprep.mubr.bf16.mxu0 0
      %936 = vmatmul.mubr.bf16.gmra.mrb[0].mxu0 %v857
      %v937 = vpop.f32.mrb[0].mxu0
      %v938 = vadd.f32 0.0, %v937
      %v939 = vpop.f32.mrb[0].mxu0
      %v940 = vpop.f32.mrb[0].mxu0
      %v941 = vadd.f32 0.0, %v940
      %v942 = vpop.f32.mrb[0].mxu0
      %943 = vmatprep.mubr.bf16.mxu0 0
      %944 = vmatmul.mubr.bf16.gmra.mrb[0].mxu0 %v860
      %v945 = vpop.f32.mrb[0].mxu0
      %v946 = vadd.f32 0.0, %v945
      %v947 = vpop.f32.mrb[0].mxu0
      %v948 = vpop.f32.mrb[0].mxu0
      %v949 = vadd.f32 0.0, %v948
      %v950 = vpop.f32.mrb[0].mxu0
      %951 = vmatprep.mubr.bf16.mxu0 0
      %952 = vmatmul.mubr.bf16.gmra.mrb[0].mxu0 %v863
      %v953 = vpop.f32.mrb[0].mxu0
      %v954 = vadd.f32 0.0, %v953
      %v955 = vpop.f32.mrb[0].mxu0
      %v956 = vpop.f32.mrb[0].mxu0
      %v957 = vadd.f32 0.0, %v956
      %v958 = vpop.f32.mrb[0].mxu0
      %959 = vmatprep.mubr.bf16.mxu0 0
      %960 = vmatmul.mubr.bf16.gmra.mrb[0].mxu0 %v866
      %v961 = vpop.f32.mrb[0].mxu0
      %v962 = vadd.f32 0.0, %v961
      %v963 = vpop.f32.mrb[0].mxu0
      %v964 = vpop.f32.mrb[0].mxu0
      %v965 = vadd.f32 0.0, %v964
      %v966 = vpop.f32.mrb[0].mxu0
      %967 = vdwg.mxu0
      %v968 = vadd.f32 %v802, %v906
      %v969 = vadd.f32 %v803, %v909
      %v970 = vadd.f32 %v804, %v914
      %v971 = vadd.f32 %v805, %v917
      %v972 = vadd.f32 %v806, %v922
      %v973 = vadd.f32 %v807, %v925
      %v974 = vadd.f32 %v808, %v930
      %v975 = vadd.f32 %v809, %v933
      %v976 = vadd.f32 %v810, %v938
      %v977 = vadd.f32 %v811, %v941
      %v978 = vadd.f32 %v812, %v946
      %v979 = vadd.f32 %v813, %v949
      %v980 = vadd.f32 %v814, %v954
      %v981 = vadd.f32 %v815, %v957
      %v982 = vadd.f32 %v816, %v962
      %v983 = vadd.f32 %v817, %v965
      %v984 = vld [vmem:[%s651 + $0x2] sm:$0xff]
      %v985 = vld [vmem:[%s651 + $0xa] sm:$0xff]
      %v986 = vld [vmem:[%s651 + $0x1a] sm:$0xff]
      %v987 = vld [vmem:[%s651 + $0x22] sm:$0xff]
      %v988 = vld [vmem:[%s651 + $0x32] sm:$0xff]
      %v989 = vld [vmem:[%s651 + $0x3a] sm:$0xff]
      %v990 = vld [vmem:[%s651 + $0x4a] sm:$0xff]
      %v991 = vld [vmem:[%s651 + $0x52] sm:$0xff]
      %v992 = vld [vmem:[%s651 + $0x62] sm:$0xff]
      %v993 = vld [vmem:[%s651 + $0x6a] sm:$0xff]
      %v994 = vld [vmem:[%s651 + $0x7a] sm:$0xff]
      %v995 = vld [vmem:[%s651 + $0x82] sm:$0xff]
      %v996 = vld [vmem:[%s651 + $0x92] sm:$0xff]
      %v997 = vld [vmem:[%s651 + $0x9a] sm:$0xff]
      %v998 = vld [vmem:[%s651 + $0xaa] sm:$0xff]
      %v999 = vld [vmem:[%s651 + $0xb2] sm:$0xff]
      %v1000 = vpack.c.bf16 %v985, %v984
      %v1001 = vpack.c.bf16 %v987, %v986
      %v1002 = vpack.c.bf16 %v989, %v988
      %v1003 = vpack.c.bf16 %v991, %v990
      %v1004 = vpack.c.bf16 %v993, %v992
      %v1005 = vpack.c.bf16 %v995, %v994
      %v1006 = vpack.c.bf16 %v997, %v996
      %v1007 = vpack.c.bf16 %v999, %v998
      %s1008 = scalar_lea.vmem %s1, 10
      %v1009 = vld [vmem:[%s1008] sm:$0x3]
      %v1011 = vsel %vm235, %v1000, 0
      %v1014 = vsel %vm235, %v1001, 0
      %v1017 = vsel %vm235, %v1002, 0
      %v1020 = vsel %vm235, %v1003, 0
      %v1023 = vsel %vm235, %v1004, 0
      %v1026 = vsel %vm235, %v1005, 0
      %v1029 = vsel %vm235, %v1006, 0
      %v1032 = vsel %vm235, %v1007, 0
      %v1035 = vsel %vm260, %v1009, 0
      %1037 = vmatprep.subr.bf16.mxu0 0
      %1038 = vmatpush1.bf16.msra.mxu0 %v1035
      %1039 = vmatprep.subr.bf16.mxu0 0
      %1040 = vmatpush1.bf16.msra.mxu0 0
      %1041 = vmatprep.subr.bf16.mxu0 0
      %1042 = vmatpush1.bf16.msra.mxu0 0
      %1043 = vmatprep.subr.bf16.mxu0 0
      %1044 = vmatpush1.bf16.msra.mxu0 0
      %1045 = vmatprep.subr.bf16.mxu0 0
      %1046 = vmatpush1.bf16.msra.mxu0 0
      %1047 = vmatprep.subr.bf16.mxu0 0
      %1048 = vmatpush1.bf16.msra.mxu0 0
      %1049 = vmatprep.subr.bf16.mxu0 0
      %1050 = vmatpush1.bf16.msra.mxu0 0
      %1051 = vmatprep.subr.bf16.mxu0 0
      %1052 = vmatpush1.bf16.msra.mxu0 0
      %1053 = vmatprep.subr.bf16.mxu0 0
      %1054 = vmatpush1.bf16.msra.mxu0 0
      %1055 = vmatprep.subr.bf16.mxu0 0
      %1056 = vmatpush1.bf16.msra.mxu0 0
      %1057 = vmatprep.subr.bf16.mxu0 0
      %1058 = vmatpush1.bf16.msra.mxu0 0
      %1059 = vmatprep.subr.bf16.mxu0 0
      %1060 = vmatpush1.bf16.msra.mxu0 0
      %1061 = vmatprep.subr.bf16.mxu0 0
      %1062 = vmatpush1.bf16.msra.mxu0 0
      %1063 = vmatprep.subr.bf16.mxu0 0
      %1064 = vmatpush1.bf16.msra.mxu0 0
      %1065 = vmatprep.subr.bf16.mxu0 0
      %1066 = vmatpush1.bf16.msra.mxu0 0
      %1067 = vmatprep.subr.bf16.mxu0 0
      %1068 = vmatpush1.bf16.msra.mxu0 0
      %1069 = vmatprep.mubr.bf16.mxu0 0
      %1070 = vmatmul.mubr.bf16.gmra.mrb[0].mxu0 %v1011
      %v1071 = vpop.f32.mrb[0].mxu0
      %v1072 = vadd.f32 0.0, %v1071
      %v1073 = vpop.f32.mrb[0].mxu0
      %v1074 = vpop.f32.mrb[0].mxu0
      %v1075 = vadd.f32 0.0, %v1074
      %v1076 = vpop.f32.mrb[0].mxu0
      %1077 = vmatprep.mubr.bf16.mxu0 0
      %1078 = vmatmul.mubr.bf16.gmra.mrb[0].mxu0 %v1014
      %v1079 = vpop.f32.mrb[0].mxu0
      %v1080 = vadd.f32 0.0, %v1079
      %v1081 = vpop.f32.mrb[0].mxu0
      %v1082 = vpop.f32.mrb[0].mxu0
      %v1083 = vadd.f32 0.0, %v1082
      %v1084 = vpop.f32.mrb[0].mxu0
      %1085 = vmatprep.mubr.bf16.mxu0 0
      %1086 = vmatmul.mubr.bf16.gmra.mrb[0].mxu0 %v1017
      %v1087 = vpop.f32.mrb[0].mxu0
      %v1088 = vadd.f32 0.0, %v1087
      %v1089 = vpop.f32.mrb[0].mxu0
      %v1090 = vpop.f32.mrb[0].mxu0
      %v1091 = vadd.f32 0.0, %v1090
      %v1092 = vpop.f32.mrb[0].mxu0
      %1093 = vmatprep.mubr.bf16.mxu0 0
      %1094 = vmatmul.mubr.bf16.gmra.mrb[0].mxu0 %v1020
      %v1095 = vpop.f32.mrb[0].mxu0
      %v1096 = vadd.f32 0.0, %v1095
      %v1097 = vpop.f32.mrb[0].mxu0
      %v1098 = vpop.f32.mrb[0].mxu0
      %v1099 = vadd.f32 0.0, %v1098
      %v1100 = vpop.f32.mrb[0].mxu0
      %1101 = vmatprep.mubr.bf16.mxu0 0
      %1102 = vmatmul.mubr.bf16.gmra.mrb[0].mxu0 %v1023
      %v1103 = vpop.f32.mrb[0].mxu0
      %v1104 = vadd.f32 0.0, %v1103
      %v1105 = vpop.f32.mrb[0].mxu0
      %v1106 = vpop.f32.mrb[0].mxu0
      %v1107 = vadd.f32 0.0, %v1106
      %v1108 = vpop.f32.mrb[0].mxu0
      %1109 = vmatprep.mubr.bf16.mxu0 0
      %1110 = vmatmul.mubr.bf16.gmra.mrb[0].mxu0 %v1026
      %v1111 = vpop.f32.mrb[0].mxu0
      %v1112 = vadd.f32 0.0, %v1111
      %v1113 = vpop.f32.mrb[0].mxu0
      %v1114 = vpop.f32.mrb[0].mxu0
      %v1115 = vadd.f32 0.0, %v1114
      %v1116 = vpop.f32.mrb[0].mxu0
      %1117 = vmatprep.mubr.bf16.mxu0 0
      %1118 = vmatmul.mubr.bf16.gmra.mrb[0].mxu0 %v1029
      %v1119 = vpop.f32.mrb[0].mxu0
      %v1120 = vadd.f32 0.0, %v1119
      %v1121 = vpop.f32.mrb[0].mxu0
      %v1122 = vpop.f32.mrb[0].mxu0
      %v1123 = vadd.f32 0.0, %v1122
      %v1124 = vpop.f32.mrb[0].mxu0
      %1125 = vmatprep.mubr.bf16.mxu0 0
      %1126 = vmatmul.mubr.bf16.gmra.mrb[0].mxu0 %v1032
      %v1127 = vpop.f32.mrb[0].mxu0
      %v1128 = vadd.f32 0.0, %v1127
      %v1129 = vpop.f32.mrb[0].mxu0
      %v1130 = vpop.f32.mrb[0].mxu0
      %v1131 = vadd.f32 0.0, %v1130
      %v1132 = vpop.f32.mrb[0].mxu0
      %1133 = vdwg.mxu0
      %v1134 = vadd.f32 %v968, %v1072
      %v1135 = vadd.f32 %v969, %v1075
      %v1136 = vadd.f32 %v970, %v1080
      %v1137 = vadd.f32 %v971, %v1083
      %v1138 = vadd.f32 %v972, %v1088
      %v1139 = vadd.f32 %v973, %v1091
      %v1140 = vadd.f32 %v974, %v1096
      %v1141 = vadd.f32 %v975, %v1099
      %v1142 = vadd.f32 %v976, %v1104
      %v1143 = vadd.f32 %v977, %v1107
      %v1144 = vadd.f32 %v978, %v1112
      %v1145 = vadd.f32 %v979, %v1115
      %v1146 = vadd.f32 %v980, %v1120
      %v1147 = vadd.f32 %v981, %v1123
      %v1148 = vadd.f32 %v982, %v1128
      %v1149 = vadd.f32 %v983, %v1131
      %s1150 = scalar_lea.vmem %s169, 48
      %v1151 = vld [vmem:[%s1150] sm:$0xff]
      %v1152 = vld [vmem:[%s1150 + $0x8] sm:$0xff]
      %v1153 = vld [vmem:[%s1150 + $0x18] sm:$0xff]
      %v1154 = vld [vmem:[%s1150 + $0x20] sm:$0xff]
      %v1155 = vld [vmem:[%s1150 + $0x30] sm:$0xff]
      %v1156 = vld [vmem:[%s1150 + $0x38] sm:$0xff]
      %v1157 = vld [vmem:[%s1150 + $0x48] sm:$0xff]
      %v1158 = vld [vmem:[%s1150 + $0x50] sm:$0xff]
      %v1159 = vld [vmem:[%s1150 + $0x60] sm:$0xff]
      %v1160 = vld [vmem:[%s1150 + $0x68] sm:$0xff]
      %v1161 = vld [vmem:[%s1150 + $0x78] sm:$0xff]
      %v1162 = vld [vmem:[%s1150 + $0x80] sm:$0xff]
      %v1163 = vld [vmem:[%s1150 + $0x90] sm:$0xff]
      %v1164 = vld [vmem:[%s1150 + $0x98] sm:$0xff]
      %v1165 = vld [vmem:[%s1150 + $0xa8] sm:$0xff]
      %v1166 = vld [vmem:[%s1150 + $0xb0] sm:$0xff]
      %v1167 = vpack.c.bf16 %v1152, %v1151
      %v1168 = vpack.c.bf16 %v1154, %v1153
      %v1169 = vpack.c.bf16 %v1156, %v1155
      %v1170 = vpack.c.bf16 %v1158, %v1157
      %v1171 = vpack.c.bf16 %v1160, %v1159
      %v1172 = vpack.c.bf16 %v1162, %v1161
      %v1173 = vpack.c.bf16 %v1164, %v1163
      %v1174 = vpack.c.bf16 %v1166, %v1165
      %s1175 = scalar_lea.vmem %s1, 12
      %v1176 = vld [vmem:[%s1175] sm:$0x3]
      %v1178 = vsel %vm235, %v1167, 0
      %v1181 = vsel %vm235, %v1168, 0
      %v1184 = vsel %vm235, %v1169, 0
      %v1187 = vsel %vm235, %v1170, 0
      %v1190 = vsel %vm235, %v1171, 0
      %v1193 = vsel %vm235, %v1172, 0
      %v1196 = vsel %vm235, %v1173, 0
      %v1199 = vsel %vm235, %v1174, 0
      %v1202 = vsel %vm260, %v1176, 0
      %1204 = vmatprep.subr.bf16.mxu0 0
      %1205 = vmatpush1.bf16.msra.mxu0 %v1202
      %1206 = vmatprep.subr.bf16.mxu0 0
      %1207 = vmatpush1.bf16.msra.mxu0 0
      %1208 = vmatprep.subr.bf16.mxu0 0
      %1209 = vmatpush1.bf16.msra.mxu0 0
      %1210 = vmatprep.subr.bf16.mxu0 0
      %1211 = vmatpush1.bf16.msra.mxu0 0
      %1212 = vmatprep.subr.bf16.mxu0 0
      %1213 = vmatpush1.bf16.msra.mxu0 0
      %1214 = vmatprep.subr.bf16.mxu0 0
      %1215 = vmatpush1.bf16.msra.mxu0 0
      %1216 = vmatprep.subr.bf16.mxu0 0
      %1217 = vmatpush1.bf16.msra.mxu0 0
      %1218 = vmatprep.subr.bf16.mxu0 0
      %1219 = vmatpush1.bf16.msra.mxu0 0
      %1220 = vmatprep.subr.bf16.mxu0 0
      %1221 = vmatpush1.bf16.msra.mxu0 0
      %1222 = vmatprep.subr.bf16.mxu0 0
      %1223 = vmatpush1.bf16.msra.mxu0 0
      %1224 = vmatprep.subr.bf16.mxu0 0
      %1225 = vmatpush1.bf16.msra.mxu0 0
      %1226 = vmatprep.subr.bf16.mxu0 0
      %1227 = vmatpush1.bf16.msra.mxu0 0
      %1228 = vmatprep.subr.bf16.mxu0 0
      %1229 = vmatpush1.bf16.msra.mxu0 0
      %1230 = vmatprep.subr.bf16.mxu0 0
      %1231 = vmatpush1.bf16.msra.mxu0 0
      %1232 = vmatprep.subr.bf16.mxu0 0
      %1233 = vmatpush1.bf16.msra.mxu0 0
      %1234 = vmatprep.subr.bf16.mxu0 0
      %1235 = vmatpush1.bf16.msra.mxu0 0
      %1236 = vmatprep.mubr.bf16.mxu0 0
      %1237 = vmatmul.mubr.bf16.gmra.mrb[0].mxu0 %v1178
      %v1238 = vpop.f32.mrb[0].mxu0
      %v1239 = vadd.f32 0.0, %v1238
      %v1240 = vpop.f32.mrb[0].mxu0
      %v1241 = vpop.f32.mrb[0].mxu0
      %v1242 = vadd.f32 0.0, %v1241
      %v1243 = vpop.f32.mrb[0].mxu0
      %1244 = vmatprep.mubr.bf16.mxu0 0
      %1245 = vmatmul.mubr.bf16.gmra.mrb[0].mxu0 %v1181
      %v1246 = vpop.f32.mrb[0].mxu0
      %v1247 = vadd.f32 0.0, %v1246
      %v1248 = vpop.f32.mrb[0].mxu0
      %v1249 = vpop.f32.mrb[0].mxu0
      %v1250 = vadd.f32 0.0, %v1249
      %v1251 = vpop.f32.mrb[0].mxu0
      %1252 = vmatprep.mubr.bf16.mxu0 0
      %1253 = vmatmul.mubr.bf16.gmra.mrb[0].mxu0 %v1184
      %v1254 = vpop.f32.mrb[0].mxu0
      %v1255 = vadd.f32 0.0, %v1254
      %v1256 = vpop.f32.mrb[0].mxu0
      %v1257 = vpop.f32.mrb[0].mxu0
      %v1258 = vadd.f32 0.0, %v1257
      %v1259 = vpop.f32.mrb[0].mxu0
      %1260 = vmatprep.mubr.bf16.mxu0 0
      %1261 = vmatmul.mubr.bf16.gmra.mrb[0].mxu0 %v1187
      %v1262 = vpop.f32.mrb[0].mxu0
      %v1263 = vadd.f32 0.0, %v1262
      %v1264 = vpop.f32.mrb[0].mxu0
      %v1265 = vpop.f32.mrb[0].mxu0
      %v1266 = vadd.f32 0.0, %v1265
      %v1267 = vpop.f32.mrb[0].mxu0
      %1268 = vmatprep.mubr.bf16.mxu0 0
      %1269 = vmatmul.mubr.bf16.gmra.mrb[0].mxu0 %v1190
      %v1270 = vpop.f32.mrb[0].mxu0
      %v1271 = vadd.f32 0.0, %v1270
      %v1272 = vpop.f32.mrb[0].mxu0
      %v1273 = vpop.f32.mrb[0].mxu0
      %v1274 = vadd.f32 0.0, %v1273
      %v1275 = vpop.f32.mrb[0].mxu0
      %1276 = vmatprep.mubr.bf16.mxu0 0
      %1277 = vmatmul.mubr.bf16.gmra.mrb[0].mxu0 %v1193
      %v1278 = vpop.f32.mrb[0].mxu0
      %v1279 = vadd.f32 0.0, %v1278
      %v1280 = vpop.f32.mrb[0].mxu0
      %v1281 = vpop.f32.mrb[0].mxu0
      %v1282 = vadd.f32 0.0, %v1281
      %v1283 = vpop.f32.mrb[0].mxu0
      %1284 = vmatprep.mubr.bf16.mxu0 0
      %1285 = vmatmul.mubr.bf16.gmra.mrb[0].mxu0 %v1196
      %v1286 = vpop.f32.mrb[0].mxu0
      %v1287 = vadd.f32 0.0, %v1286
      %v1288 = vpop.f32.mrb[0].mxu0
      %v1289 = vpop.f32.mrb[0].mxu0
      %v1290 = vadd.f32 0.0, %v1289
      %v1291 = vpop.f32.mrb[0].mxu0
      %1292 = vmatprep.mubr.bf16.mxu0 0
      %1293 = vmatmul.mubr.bf16.gmra.mrb[0].mxu0 %v1199
      %v1294 = vpop.f32.mrb[0].mxu0
      %v1295 = vadd.f32 0.0, %v1294
      %v1296 = vpop.f32.mrb[0].mxu0
      %v1297 = vpop.f32.mrb[0].mxu0
      %v1298 = vadd.f32 0.0, %v1297
      %v1299 = vpop.f32.mrb[0].mxu0
      %1300 = vdwg.mxu0
      %v1301 = vadd.f32 %v1134, %v1239
      %v1302 = vadd.f32 %v1135, %v1242
      %v1303 = vadd.f32 %v1136, %v1247
      %v1304 = vadd.f32 %v1137, %v1250
      %v1305 = vadd.f32 %v1138, %v1255
      %v1306 = vadd.f32 %v1139, %v1258
      %v1307 = vadd.f32 %v1140, %v1263
      %v1308 = vadd.f32 %v1141, %v1266
      %v1309 = vadd.f32 %v1142, %v1271
      %v1310 = vadd.f32 %v1143, %v1274
      %v1311 = vadd.f32 %v1144, %v1279
      %v1312 = vadd.f32 %v1145, %v1282
      %v1313 = vadd.f32 %v1146, %v1287
      %v1314 = vadd.f32 %v1147, %v1290
      %v1315 = vadd.f32 %v1148, %v1295
      %v1316 = vadd.f32 %v1149, %v1298
      %v1317 = vld [vmem:[%s1150 + $0x1] sm:$0xff]
      %v1318 = vld [vmem:[%s1150 + $0x9] sm:$0xff]
      %v1319 = vld [vmem:[%s1150 + $0x19] sm:$0xff]
      %v1320 = vld [vmem:[%s1150 + $0x21] sm:$0xff]
      %v1321 = vld [vmem:[%s1150 + $0x31] sm:$0xff]
      %v1322 = vld [vmem:[%s1150 + $0x39] sm:$0xff]
      %v1323 = vld [vmem:[%s1150 + $0x49] sm:$0xff]
      %v1324 = vld [vmem:[%s1150 + $0x51] sm:$0xff]
      %v1325 = vld [vmem:[%s1150 + $0x61] sm:$0xff]
      %v1326 = vld [vmem:[%s1150 + $0x69] sm:$0xff]
      %v1327 = vld [vmem:[%s1150 + $0x79] sm:$0xff]
      %v1328 = vld [vmem:[%s1150 + $0x81] sm:$0xff]
      %v1329 = vld [vmem:[%s1150 + $0x91] sm:$0xff]
      %v1330 = vld [vmem:[%s1150 + $0x99] sm:$0xff]
      %v1331 = vld [vmem:[%s1150 + $0xa9] sm:$0xff]
      %v1332 = vld [vmem:[%s1150 + $0xb1] sm:$0xff]
      %v1333 = vpack.c.bf16 %v1318, %v1317
      %v1334 = vpack.c.bf16 %v1320, %v1319
      %v1335 = vpack.c.bf16 %v1322, %v1321
      %v1336 = vpack.c.bf16 %v1324, %v1323
      %v1337 = vpack.c.bf16 %v1326, %v1325
      %v1338 = vpack.c.bf16 %v1328, %v1327
      %v1339 = vpack.c.bf16 %v1330, %v1329
      %v1340 = vpack.c.bf16 %v1332, %v1331
      %s1341 = scalar_lea.vmem %s1, 14
      %v1342 = vld [vmem:[%s1341] sm:$0x3]
      %v1344 = vsel %vm235, %v1333, 0
      %v1347 = vsel %vm235, %v1334, 0
      %v1350 = vsel %vm235, %v1335, 0
      %v1353 = vsel %vm235, %v1336, 0
      %v1356 = vsel %vm235, %v1337, 0
      %v1359 = vsel %vm235, %v1338, 0
      %v1362 = vsel %vm235, %v1339, 0
      %v1365 = vsel %vm235, %v1340, 0
      %v1368 = vsel %vm260, %v1342, 0
      %1370 = vmatprep.subr.bf16.mxu0 0
      %1371 = vmatpush1.bf16.msra.mxu0 %v1368
      %1372 = vmatprep.subr.bf16.mxu0 0
      %1373 = vmatpush1.bf16.msra.mxu0 0
      %1374 = vmatprep.subr.bf16.mxu0 0
      %1375 = vmatpush1.bf16.msra.mxu0 0
      %1376 = vmatprep.subr.bf16.mxu0 0
      %1377 = vmatpush1.bf16.msra.mxu0 0
      %1378 = vmatprep.subr.bf16.mxu0 0
      %1379 = vmatpush1.bf16.msra.mxu0 0
      %1380 = vmatprep.subr.bf16.mxu0 0
      %1381 = vmatpush1.bf16.msra.mxu0 0
      %1382 = vmatprep.subr.bf16.mxu0 0
      %1383 = vmatpush1.bf16.msra.mxu0 0
      %1384 = vmatprep.subr.bf16.mxu0 0
      %1385 = vmatpush1.bf16.msra.mxu0 0
      %1386 = vmatprep.subr.bf16.mxu0 0
      %1387 = vmatpush1.bf16.msra.mxu0 0
      %1388 = vmatprep.subr.bf16.mxu0 0
      %1389 = vmatpush1.bf16.msra.mxu0 0
      %1390 = vmatprep.subr.bf16.mxu0 0
      %1391 = vmatpush1.bf16.msra.mxu0 0
      %1392 = vmatprep.subr.bf16.mxu0 0
      %1393 = vmatpush1.bf16.msra.mxu0 0
      %1394 = vmatprep.subr.bf16.mxu0 0
      %1395 = vmatpush1.bf16.msra.mxu0 0
      %1396 = vmatprep.subr.bf16.mxu0 0
      %1397 = vmatpush1.bf16.msra.mxu0 0
      %1398 = vmatprep.subr.bf16.mxu0 0
      %1399 = vmatpush1.bf16.msra.mxu0 0
      %1400 = vmatprep.subr.bf16.mxu0 0
      %1401 = vmatpush1.bf16.msra.mxu0 0
      %1402 = vmatprep.mubr.bf16.mxu0 0
      %1403 = vmatmul.mubr.bf16.gmra.mrb[0].mxu0 %v1344
      %v1404 = vpop.f32.mrb[0].mxu0
      %v1405 = vadd.f32 0.0, %v1404
      %v1406 = vpop.f32.mrb[0].mxu0
      %v1407 = vpop.f32.mrb[0].mxu0
      %v1408 = vadd.f32 0.0, %v1407
      %v1409 = vpop.f32.mrb[0].mxu0
      %1410 = vmatprep.mubr.bf16.mxu0 0
      %1411 = vmatmul.mubr.bf16.gmra.mrb[0].mxu0 %v1347
      %v1412 = vpop.f32.mrb[0].mxu0
      %v1413 = vadd.f32 0.0, %v1412
      %v1414 = vpop.f32.mrb[0].mxu0
      %v1415 = vpop.f32.mrb[0].mxu0
      %v1416 = vadd.f32 0.0, %v1415
      %v1417 = vpop.f32.mrb[0].mxu0
      %1418 = vmatprep.mubr.bf16.mxu0 0
      %1419 = vmatmul.mubr.bf16.gmra.mrb[0].mxu0 %v1350
      %v1420 = vpop.f32.mrb[0].mxu0
      %v1421 = vadd.f32 0.0, %v1420
      %v1422 = vpop.f32.mrb[0].mxu0
      %v1423 = vpop.f32.mrb[0].mxu0
      %v1424 = vadd.f32 0.0, %v1423
      %v1425 = vpop.f32.mrb[0].mxu0
      %1426 = vmatprep.mubr.bf16.mxu0 0
      %1427 = vmatmul.mubr.bf16.gmra.mrb[0].mxu0 %v1353
      %v1428 = vpop.f32.mrb[0].mxu0
      %v1429 = vadd.f32 0.0, %v1428
      %v1430 = vpop.f32.mrb[0].mxu0
      %v1431 = vpop.f32.mrb[0].mxu0
      %v1432 = vadd.f32 0.0, %v1431
      %v1433 = vpop.f32.mrb[0].mxu0
      %1434 = vmatprep.mubr.bf16.mxu0 0
      %1435 = vmatmul.mubr.bf16.gmra.mrb[0].mxu0 %v1356
      %v1436 = vpop.f32.mrb[0].mxu0
      %v1437 = vadd.f32 0.0, %v1436
      %v1438 = vpop.f32.mrb[0].mxu0
      %v1439 = vpop.f32.mrb[0].mxu0
      %v1440 = vadd.f32 0.0, %v1439
      %v1441 = vpop.f32.mrb[0].mxu0
      %1442 = vmatprep.mubr.bf16.mxu0 0
      %1443 = vmatmul.mubr.bf16.gmra.mrb[0].mxu0 %v1359
      %v1444 = vpop.f32.mrb[0].mxu0
      %v1445 = vadd.f32 0.0, %v1444
      %v1446 = vpop.f32.mrb[0].mxu0
      %v1447 = vpop.f32.mrb[0].mxu0
      %v1448 = vadd.f32 0.0, %v1447
      %v1449 = vpop.f32.mrb[0].mxu0
      %1450 = vmatprep.mubr.bf16.mxu0 0
      %1451 = vmatmul.mubr.bf16.gmra.mrb[0].mxu0 %v1362
      %v1452 = vpop.f32.mrb[0].mxu0
      %v1453 = vadd.f32 0.0, %v1452
      %v1454 = vpop.f32.mrb[0].mxu0
      %v1455 = vpop.f32.mrb[0].mxu0
      %v1456 = vadd.f32 0.0, %v1455
      %v1457 = vpop.f32.mrb[0].mxu0
      %1458 = vmatprep.mubr.bf16.mxu0 0
      %1459 = vmatmul.mubr.bf16.gmra.mrb[0].mxu0 %v1365
      %v1460 = vpop.f32.mrb[0].mxu0
      %v1461 = vadd.f32 0.0, %v1460
      %v1462 = vpop.f32.mrb[0].mxu0
      %v1463 = vpop.f32.mrb[0].mxu0
      %v1464 = vadd.f32 0.0, %v1463
      %v1465 = vpop.f32.mrb[0].mxu0
      %1466 = vdwg.mxu0
      %v1467 = vadd.f32 %v1301, %v1405
      %v1468 = vadd.f32 %v1302, %v1408
      %v1469 = vadd.f32 %v1303, %v1413
      %v1470 = vadd.f32 %v1304, %v1416
      %v1471 = vadd.f32 %v1305, %v1421
      %v1472 = vadd.f32 %v1306, %v1424
      %v1473 = vadd.f32 %v1307, %v1429
      %v1474 = vadd.f32 %v1308, %v1432
      %v1475 = vadd.f32 %v1309, %v1437
      %v1476 = vadd.f32 %v1310, %v1440
      %v1477 = vadd.f32 %v1311, %v1445
      %v1478 = vadd.f32 %v1312, %v1448
      %v1479 = vadd.f32 %v1313, %v1453
      %v1480 = vadd.f32 %v1314, %v1456
      %v1481 = vadd.f32 %v1315, %v1461
      %v1482 = vadd.f32 %v1316, %v1464
      %v1483 = vld [vmem:[%s1150 + $0x2] sm:$0xff]
      %v1484 = vld [vmem:[%s1150 + $0xa] sm:$0xff]
      %v1485 = vld [vmem:[%s1150 + $0x1a] sm:$0xff]
      %v1486 = vld [vmem:[%s1150 + $0x22] sm:$0xff]
      %v1487 = vld [vmem:[%s1150 + $0x32] sm:$0xff]
      %v1488 = vld [vmem:[%s1150 + $0x3a] sm:$0xff]
      %v1489 = vld [vmem:[%s1150 + $0x4a] sm:$0xff]
      %v1490 = vld [vmem:[%s1150 + $0x52] sm:$0xff]
      %v1491 = vld [vmem:[%s1150 + $0x62] sm:$0xff]
      %v1492 = vld [vmem:[%s1150 + $0x6a] sm:$0xff]
      %v1493 = vld [vmem:[%s1150 + $0x7a] sm:$0xff]
      %v1494 = vld [vmem:[%s1150 + $0x82] sm:$0xff]
      %v1495 = vld [vmem:[%s1150 + $0x92] sm:$0xff]
      %v1496 = vld [vmem:[%s1150 + $0x9a] sm:$0xff]
      %v1497 = vld [vmem:[%s1150 + $0xaa] sm:$0xff]
      %v1498 = vld [vmem:[%s1150 + $0xb2] sm:$0xff]
      %v1499 = vpack.c.bf16 %v1484, %v1483
      %v1500 = vpack.c.bf16 %v1486, %v1485
      %v1501 = vpack.c.bf16 %v1488, %v1487
      %v1502 = vpack.c.bf16 %v1490, %v1489
      %v1503 = vpack.c.bf16 %v1492, %v1491
      %v1504 = vpack.c.bf16 %v1494, %v1493
      %v1505 = vpack.c.bf16 %v1496, %v1495
      %v1506 = vpack.c.bf16 %v1498, %v1497
      %s1507 = scalar_lea.vmem %s1, 16
      %v1508 = vld [vmem:[%s1507] sm:$0x3]
      %v1510 = vsel %vm235, %v1499, 0
      %v1513 = vsel %vm235, %v1500, 0
      %v1516 = vsel %vm235, %v1501, 0
      %v1519 = vsel %vm235, %v1502, 0
      %v1522 = vsel %vm235, %v1503, 0
      %v1525 = vsel %vm235, %v1504, 0
      %v1528 = vsel %vm235, %v1505, 0
      %v1531 = vsel %vm235, %v1506, 0
      %v1534 = vsel %vm260, %v1508, 0
      %1536 = vmatprep.subr.bf16.mxu0 0
      %1537 = vmatpush1.bf16.msra.mxu0 %v1534
      %1538 = vmatprep.subr.bf16.mxu0 0
      %1539 = vmatpush1.bf16.msra.mxu0 0
      %1540 = vmatprep.subr.bf16.mxu0 0
      %1541 = vmatpush1.bf16.msra.mxu0 0
      %1542 = vmatprep.subr.bf16.mxu0 0
      %1543 = vmatpush1.bf16.msra.mxu0 0
      %1544 = vmatprep.subr.bf16.mxu0 0
      %1545 = vmatpush1.bf16.msra.mxu0 0
      %1546 = vmatprep.subr.bf16.mxu0 0
      %1547 = vmatpush1.bf16.msra.mxu0 0
      %1548 = vmatprep.subr.bf16.mxu0 0
      %1549 = vmatpush1.bf16.msra.mxu0 0
      %1550 = vmatprep.subr.bf16.mxu0 0
      %1551 = vmatpush1.bf16.msra.mxu0 0
      %1552 = vmatprep.subr.bf16.mxu0 0
      %1553 = vmatpush1.bf16.msra.mxu0 0
      %1554 = vmatprep.subr.bf16.mxu0 0
      %1555 = vmatpush1.bf16.msra.mxu0 0
      %1556 = vmatprep.subr.bf16.mxu0 0
      %1557 = vmatpush1.bf16.msra.mxu0 0
      %1558 = vmatprep.subr.bf16.mxu0 0
      %1559 = vmatpush1.bf16.msra.mxu0 0
      %1560 = vmatprep.subr.bf16.mxu0 0
      %1561 = vmatpush1.bf16.msra.mxu0 0
      %1562 = vmatprep.subr.bf16.mxu0 0
      %1563 = vmatpush1.bf16.msra.mxu0 0
      %1564 = vmatprep.subr.bf16.mxu0 0
      %1565 = vmatpush1.bf16.msra.mxu0 0
      %1566 = vmatprep.subr.bf16.mxu0 0
      %1567 = vmatpush1.bf16.msra.mxu0 0
      %1568 = vmatprep.mubr.bf16.mxu0 0
      %1569 = vmatmul.mubr.bf16.gmra.mrb[0].mxu0 %v1510
      %v1570 = vpop.f32.mrb[0].mxu0
      %v1571 = vadd.f32 0.0, %v1570
      %v1572 = vpop.f32.mrb[0].mxu0
      %v1573 = vpop.f32.mrb[0].mxu0
      %v1574 = vadd.f32 0.0, %v1573
      %v1575 = vpop.f32.mrb[0].mxu0
      %1576 = vmatprep.mubr.bf16.mxu0 0
      %1577 = vmatmul.mubr.bf16.gmra.mrb[0].mxu0 %v1513
      %v1578 = vpop.f32.mrb[0].mxu0
      %v1579 = vadd.f32 0.0, %v1578
      %v1580 = vpop.f32.mrb[0].mxu0
      %v1581 = vpop.f32.mrb[0].mxu0
      %v1582 = vadd.f32 0.0, %v1581
      %v1583 = vpop.f32.mrb[0].mxu0
      %1584 = vmatprep.mubr.bf16.mxu0 0
      %1585 = vmatmul.mubr.bf16.gmra.mrb[0].mxu0 %v1516
      %v1586 = vpop.f32.mrb[0].mxu0
      %v1587 = vadd.f32 0.0, %v1586
      %v1588 = vpop.f32.mrb[0].mxu0
      %v1589 = vpop.f32.mrb[0].mxu0
      %v1590 = vadd.f32 0.0, %v1589
      %v1591 = vpop.f32.mrb[0].mxu0
      %1592 = vmatprep.mubr.bf16.mxu0 0
      %1593 = vmatmul.mubr.bf16.gmra.mrb[0].mxu0 %v1519
      %v1594 = vpop.f32.mrb[0].mxu0
      %v1595 = vadd.f32 0.0, %v1594
      %v1596 = vpop.f32.mrb[0].mxu0
      %v1597 = vpop.f32.mrb[0].mxu0
      %v1598 = vadd.f32 0.0, %v1597
      %v1599 = vpop.f32.mrb[0].mxu0
      %1600 = vmatprep.mubr.bf16.mxu0 0
      %1601 = vmatmul.mubr.bf16.gmra.mrb[0].mxu0 %v1522
      %v1602 = vpop.f32.mrb[0].mxu0
      %v1603 = vadd.f32 0.0, %v1602
      %v1604 = vpop.f32.mrb[0].mxu0
      %v1605 = vpop.f32.mrb[0].mxu0
      %v1606 = vadd.f32 0.0, %v1605
      %v1607 = vpop.f32.mrb[0].mxu0
      %1608 = vmatprep.mubr.bf16.mxu0 0
      %1609 = vmatmul.mubr.bf16.gmra.mrb[0].mxu0 %v1525
      %v1610 = vpop.f32.mrb[0].mxu0
      %v1611 = vadd.f32 0.0, %v1610
      %v1612 = vpop.f32.mrb[0].mxu0
      %v1613 = vpop.f32.mrb[0].mxu0
      %v1614 = vadd.f32 0.0, %v1613
      %v1615 = vpop.f32.mrb[0].mxu0
      %1616 = vmatprep.mubr.bf16.mxu0 0
      %1617 = vmatmul.mubr.bf16.gmra.mrb[0].mxu0 %v1528
      %v1618 = vpop.f32.mrb[0].mxu0
      %v1619 = vadd.f32 0.0, %v1618
      %v1620 = vpop.f32.mrb[0].mxu0
      %v1621 = vpop.f32.mrb[0].mxu0
      %v1622 = vadd.f32 0.0, %v1621
      %v1623 = vpop.f32.mrb[0].mxu0
      %1624 = vmatprep.mubr.bf16.mxu0 0
      %1625 = vmatmul.mubr.bf16.gmra.mrb[0].mxu0 %v1531
      %v1626 = vpop.f32.mrb[0].mxu0
      %v1627 = vadd.f32 0.0, %v1626
      %v1628 = vpop.f32.mrb[0].mxu0
      %v1629 = vpop.f32.mrb[0].mxu0
      %v1630 = vadd.f32 0.0, %v1629
      %v1631 = vpop.f32.mrb[0].mxu0
      %1632 = vdwg.mxu0
      %v1633 = vadd.f32 %v1467, %v1571
      %v1634 = vadd.f32 %v1468, %v1574
      %v1635 = vadd.f32 %v1469, %v1579
      %v1636 = vadd.f32 %v1470, %v1582
      %v1637 = vadd.f32 %v1471, %v1587
      %v1638 = vadd.f32 %v1472, %v1590
      %v1639 = vadd.f32 %v1473, %v1595
      %v1640 = vadd.f32 %v1474, %v1598
      %v1641 = vadd.f32 %v1475, %v1603
      %v1642 = vadd.f32 %v1476, %v1606
      %v1643 = vadd.f32 %v1477, %v1611
      %v1644 = vadd.f32 %v1478, %v1614
      %v1645 = vadd.f32 %v1479, %v1619
      %v1646 = vadd.f32 %v1480, %v1622
      %v1647 = vadd.f32 %v1481, %v1627
      %v1648 = vadd.f32 %v1482, %v1630
      %vm1649 = vcmask 64512
      %1650 = vst.msk [vmem:[%s181] sm:$0xff] %vm1649, %v1633
      %1651 = vst.msk [vmem:[%s181 + $0x8] sm:$0xff] %vm1649, %v1634
      %1652 = vst.msk [vmem:[%s181 + $0x10] sm:$0xff] %vm1649, %v1635
      %1653 = vst.msk [vmem:[%s181 + $0x18] sm:$0xff] %vm1649, %v1636
      %1654 = vst.msk [vmem:[%s181 + $0x20] sm:$0xff] %vm1649, %v1637
      %1655 = vst.msk [vmem:[%s181 + $0x28] sm:$0xff] %vm1649, %v1638
      %1656 = vst.msk [vmem:[%s181 + $0x30] sm:$0xff] %vm1649, %v1639
      %1657 = vst.msk [vmem:[%s181 + $0x38] sm:$0xff] %vm1649, %v1640
      %1658 = vst.msk [vmem:[%s181 + $0x40] sm:$0xff] %vm1649, %v1641
      %1659 = vst.msk [vmem:[%s181 + $0x48] sm:$0xff] %vm1649, %v1642
      %1660 = vst.msk [vmem:[%s181 + $0x50] sm:$0xff] %vm1649, %v1643
      %1661 = vst.msk [vmem:[%s181 + $0x58] sm:$0xff] %vm1649, %v1644
      %1662 = vst.msk [vmem:[%s181 + $0x60] sm:$0xff] %vm1649, %v1645
      %1663 = vst.msk [vmem:[%s181 + $0x68] sm:$0xff] %vm1649, %v1646
      %1664 = vst.msk [vmem:[%s181 + $0x70] sm:$0xff] %vm1649, %v1647
      %1665 = vst.msk [vmem:[%s181 + $0x78] sm:$0xff] %vm1649, %v1648
      %s1666 = smul.u32 8, %s18
      %p1667 = scmp.lt.s32.totalorder %s17, 1
      %s1668 = scalar_select %p1667, %s17, 1
      %p1669 = scmp.lt.s32.totalorder %s1666, 15
      %s1670 = scalar_select %p1669, %s1666, 15
      %s1671 = smul.addr %s1670, 2
      %s1672 = smul.addr %s1668, 32
      %s1673 = sadd.s32 %s1671, %s1672
      %s1674 = smul.addr %s1673, 8
      %s1675 = scalar_lea.vmem %s2, %s1674
      // Predicated region
      $region29: #{tpu_custom_call.1} parent=27 // pred_check
        %p1676 = pneg %p96
      $region30: #{tpu_custom_call.1} parent=27 // pred_check_branch
        %1678 = sbr.rel (%p1676) target = $region32
      $region31: #{tpu_custom_call.1} parent=27 // pred_region
        %s1679 = smul.u32 8, %s18
      $region32: #{tpu_custom_call.1} parent=27 // pred_fallthru
        _
    $region28: #{tpu_custom_call.1} parent=5 // pred_fallthru
      _
    %p1680 = scmp.le.s32.totalorder 2, %s8
    // Predicated region
    $region33: #{tpu_custom_call.1} parent=5 // pred_check
      %p1681 = pneg %p1680
    $region34: #{tpu_custom_call.1} parent=5 // pred_check_branch
      %1683 = sbr.rel (%p1681) target = $region36
    $region35: #{tpu_custom_call.1} parent=5 // pred_region
      %s1684 = ssub.s32 %s8, 2
      // Predicated region
      $region37: #{tpu_custom_call.1} parent=35 // pred_check
        %p1685 = pneg %p102
      $region38: #{tpu_custom_call.1} parent=35 // pred_check_branch
        %1687 = sbr.rel (%p1685) target = $region40
      $region39: #{tpu_custom_call.1} parent=35 // pred_region
        %s1688 = smul.u32 8, %s20
        %p1689 = scmp.lt.s32.totalorder %s19, 1
        %s1690 = scalar_select %p1689, %s19, 1
        %p1691 = scmp.lt.s32.totalorder %s1688, 15
        %s1692 = scalar_select %p1691, %s1688, 15
        %s1693 = smul.addr %s1692, 2
        %s1694 = smul.addr %s1690, 32
        %s1695 = sadd.s32 %s1693, %s1694
        %s1696 = smul.addr %s1695, 8
        %s1697 = scalar_lea.vmem %s2, %s1696
      $region40: #{tpu_custom_call.1} parent=35 // pred_fallthru
        _
    $region36: #{tpu_custom_call.1} parent=5 // pred_fallthru
      _
  $region6: #{tpu_custom_call.1} parent=0 // loop_footer
    %s12 = sadd.s32 1, %s8
  $region7: #{tpu_custom_call.1} parent=0 // loop_footer_branch
    %7 = sbr.rel target = $region3
  $region8: #{tpu_custom_call.1} parent=0 // loop_exit
    _

</llo_original>
